<compile_context>
chip_gen: v5e
topology: v5e:2x2
jax: 0.10.0
libtpu: 0.0.40
codegen_flags: <defaults>
</compile_context>

<pallas_src>
import jax
import jax.numpy as jnp
import numpy as np
from jax.experimental import pallas as pl
from jax.experimental.pallas import tpu as pltpu

EPS = 1e-5


def _relu_conv1x1_bn_kernel(x_ref, w_ref, gb_ref, o_ref):
    # x_ref:  (C_in, P)    channel-major pixels, f32
    # w_ref:  (C_out, C_in) 1x1-conv weight, bf16 (halved DMA)
    # gb_ref: (C_out, 2)   column 0 = gamma, column 1 = beta, f32
    # o_ref:  (C_out, P)   f32
    x = jnp.maximum(x_ref[...], 0.0)                       # ReLU (VPU, f32)
    y = jnp.dot(w_ref[...], x.astype(jnp.bfloat16),
                preferred_element_type=jnp.float32)        # MXU bf16xbf16 -> f32

    # BatchNorm2d, training mode: per-output-channel batch statistics over the
    # pixel axis, biased variance, one-pass sum / sum-of-squares.
    p = y.shape[1]
    inv_p = 1.0 / p
    s = jnp.sum(y, axis=1, keepdims=True)                  # (C_out, 1)
    ss = jnp.sum(y * y, axis=1, keepdims=True)             # (C_out, 1)
    mean = s * inv_p
    var = ss * inv_p - mean * mean
    inv_std = jax.lax.rsqrt(var + EPS)

    scale = inv_std * gb_ref[:, 0:1]                       # fold gamma
    shift = gb_ref[:, 1:2] - mean * scale                  # fold beta & mean
    o_ref[...] = y * scale + shift                         # single FMA-style epilogue


def relu_conv1x1_bn(x_nchw, w_oihw, gamma, beta):
    """x_nchw: (N, C_in, H, W); w_oihw: (C_out, C_in, 1, 1); gamma/beta: (C_out,)."""
    N, C_in, H, W = x_nchw.shape
    C_out = w_oihw.shape[0]
    P = N * H * W

    # Channel-major flattening.  For N == 1 (the module's shape) this is a pure
    # reshape -> no standalone XLA transpose kernels on either side.
    if N == 1:
        x_cm = x_nchw.reshape(C_in, P)
    else:
        x_cm = jnp.transpose(x_nchw, (1, 0, 2, 3)).reshape(C_in, P)

    w_mat = w_oihw.reshape(C_out, C_in).astype(jnp.bfloat16)      # (C_out, C_in)
    gb = jnp.stack([gamma.astype(jnp.float32),
                    beta.astype(jnp.float32)], axis=1)            # (C_out, 2)

    out_cm = pl.pallas_call(
        _relu_conv1x1_bn_kernel,
        out_shape=jax.ShapeDtypeStruct((C_out, P), jnp.float32),
        grid_spec=pltpu.PrefetchScalarGridSpec(
            num_scalar_prefetch=0,
            grid=(1,),
            in_specs=[
                pl.BlockSpec((C_in, P), lambda i: (0, 0)),
                pl.BlockSpec((C_out, C_in), lambda i: (0, 0)),
                pl.BlockSpec((C_out, 2), lambda i: (0, 0)),
            ],
            out_specs=pl.BlockSpec((C_out, P), lambda i: (0, 0)),
        ),
        compiler_params=pltpu.CompilerParams(
            dimension_semantics=("arbitrary",)),
    )(x_cm, w_mat, gb)

    if N == 1:
        return out_cm.reshape(1, C_out, H, W)
    return jnp.transpose(out_cm.reshape(C_out, N, H, W), (1, 0, 2, 3))


def _reference_f32(x_nchw, w_oihw, gamma, beta):
    """Full-f32 PyTorch-semantics reference (HIGHEST matmul precision)."""
    N, C_in, H, W = x_nchw.shape
    C_out = w_oihw.shape[0]
    x = jnp.maximum(x_nchw, 0.0)
    xr = jnp.transpose(x, (0, 2, 3, 1)).reshape(-1, C_in)
    w = jnp.transpose(w_oihw.reshape(C_out, C_in), (1, 0))
    y = jnp.dot(xr, w, precision=jax.lax.Precision.HIGHEST)
    mean = jnp.mean(y, axis=0, keepdims=True)
    var = jnp.mean((y - mean) ** 2, axis=0, keepdims=True)
    yn = (y - mean) / jnp.sqrt(var + EPS) * gamma[None, :] + beta[None, :]
    return jnp.transpose(yn.reshape(N, H, W, C_out), (0, 3, 1, 2))


def _reference_matched(x_nchw, w_oihw, gamma, beta):
    """Reference with the same bf16 mixed-precision choices as the kernel."""
    N, C_in, H, W = x_nchw.shape
    C_out = w_oihw.shape[0]
    x_cm = jnp.transpose(x_nchw, (1, 0, 2, 3)).reshape(C_in, -1)
    xb = jnp.maximum(x_cm, 0.0).astype(jnp.bfloat16)
    wb = w_oihw.reshape(C_out, C_in).astype(jnp.bfloat16)
    y = jnp.dot(wb, xb, preferred_element_type=jnp.float32)
    mean = jnp.mean(y, axis=1, keepdims=True)
    var = jnp.mean(y * y, axis=1, keepdims=True) - mean * mean
    yn = (y - mean) * jax.lax.rsqrt(var + EPS) * gamma[:, None] + beta[:, None]
    return jnp.transpose(yn.reshape(C_out, N, H, W), (1, 0, 2, 3))


if __name__ == "__main__":
    key = jax.random.PRNGKey(0)
    k_x, k_w, k_g, k_b = jax.random.split(key, 4)

    # Shapes implied by the module: input (1, 1024, 7, 7), conv 1024 -> 128.
    N, C_in, H, W, C_out = 1, 1024, 7, 7, 128
    x = jax.random.normal(k_x, (N, C_in, H, W), dtype=jnp.float32)
    w = jax.random.normal(k_w, (C_out, C_in, 1, 1), dtype=jnp.float32) * 0.02
    gamma = 1.0 + 0.1 * jax.random.normal(k_g, (C_out,), dtype=jnp.float32)
    beta = 0.1 * jax.random.normal(k_b, (C_out,), dtype=jnp.float32)

    out = jax.block_until_ready(relu_conv1x1_bn(x, w, gamma, beta))
    assert out.shape == (N, C_out, H, W)

    # Tight check against a reference using identical mixed-precision choices.
    ref_m = jax.block_until_ready(_reference_matched(x, w, gamma, beta))
    np.testing.assert_allclose(np.asarray(out), np.asarray(ref_m),
                               rtol=1e-4, atol=1e-4)

    # Semantics check against the full-f32 PyTorch-style reference; tolerance
    # accounts for the bf16 matmul inputs (f32 accumulation).
    ref_f = jax.block_until_ready(_reference_f32(x, w, gamma, beta))
    np.testing.assert_allclose(np.asarray(out), np.asarray(ref_f),
                               rtol=3e-2, atol=3e-2)

    print("KERNEL_OK")
</pallas_src>

<mosaic_0001>
module attributes {stable_mosaic.version = 11 : i64} {
  func.func @_relu_conv1x1_bn_kernel(%arg0: i32, %arg1: memref<1024x49xf32, #tpu.memory_space<vmem>>, %arg2: memref<128x1024xbf16, #tpu.memory_space<vmem>>, %arg3: memref<128x2xf32, #tpu.memory_space<vmem>>, %arg4: memref<128x49xf32, #tpu.memory_space<vmem>>) attributes {dimension_semantics = [#tpu.dimension_semantics<arbitrary>], iteration_bounds = array<i64: 1>, scalar_prefetch = 0 : i64, scratch_operands = 0 : i64, tpu.core_type = #tpu.core_type<tc>, window_params = [{pipeline_mode = #tpu.pipeline_mode<synchronous>, transform_indices = @transform_0, window_bounds = array<i64: 1024, 49>}, {pipeline_mode = #tpu.pipeline_mode<synchronous>, transform_indices = @transform_1, window_bounds = array<i64: 128, 1024>}, {pipeline_mode = #tpu.pipeline_mode<synchronous>, transform_indices = @transform_2, window_bounds = array<i64: 128, 2>}, {pipeline_mode = #tpu.pipeline_mode<synchronous>, transform_indices = @transform_3, window_bounds = array<i64: 128, 49>}]} {
    %c0 = arith.constant 0 : index
    %c0_0 = arith.constant 0 : index
    %0 = vector.load %arg1[%c0, %c0_0] : memref<1024x49xf32, #tpu.memory_space<vmem>>, vector<1024x49xf32>
    %cst = arith.constant 0.000000e+00 : f32
    %1 = vector.broadcast %cst : f32 to vector<1024x49xf32>
    %2 = arith.maximumf %0, %1 : vector<1024x49xf32>
    %c0_1 = arith.constant 0 : index
    %c0_2 = arith.constant 0 : index
    %3 = vector.load %arg2[%c0_1, %c0_2] : memref<128x1024xbf16, #tpu.memory_space<vmem>>, vector<128x1024xbf16>
    %4 = arith.truncf %2 : vector<1024x49xf32> to vector<1024x49xbf16>
    %cst_3 = arith.constant dense<0.000000e+00> : vector<128x49xf32>
    %5 = tpu.matmul %3, %4, %cst_3 {dimension_numbers = #tpu.dot_dimension_numbers<[1], [0], [0], [1], [0, 0, 1, 1], [], []>} : vector<128x1024xbf16>, vector<1024x49xbf16>, vector<128x49xf32> -> vector<128x49xf32>
    %cst_4 = arith.constant dense<0.000000e+00> : vector<128xf32>
    %6 = vector.multi_reduction <add>, %5, %cst_4 [1] : vector<128x49xf32> to vector<128xf32>
    %7 = vector.shape_cast %6 : vector<128xf32> to vector<128x1xf32>
    %8 = arith.mulf %5, %5 : vector<128x49xf32>
    %cst_5 = arith.constant dense<0.000000e+00> : vector<128xf32>
    %9 = vector.multi_reduction <add>, %8, %cst_5 [1] : vector<128x49xf32> to vector<128xf32>
    %10 = vector.shape_cast %9 : vector<128xf32> to vector<128x1xf32>
    %cst_6 = arith.constant 0.0204081628 : f32
    %11 = vector.broadcast %cst_6 : f32 to vector<128x1xf32>
    %12 = arith.mulf %7, %11 : vector<128x1xf32>
    %cst_7 = arith.constant 0.0204081628 : f32
    %13 = vector.broadcast %cst_7 : f32 to vector<128x1xf32>
    %14 = arith.mulf %10, %13 : vector<128x1xf32>
    %15 = arith.mulf %12, %12 : vector<128x1xf32>
    %16 = arith.subf %14, %15 : vector<128x1xf32>
    %cst_8 = arith.constant 9.99999974E-6 : f32
    %17 = vector.broadcast %cst_8 : f32 to vector<128x1xf32>
    %18 = arith.addf %16, %17 : vector<128x1xf32>
    %19 = math.rsqrt %18 : vector<128x1xf32>
    %c0_9 = arith.constant 0 : index
    %c0_10 = arith.constant 0 : index
    %20 = vector.load %arg3[%c0_9, %c0_10] : memref<128x2xf32, #tpu.memory_space<vmem>>, vector<128x1xf32>
    %21 = arith.mulf %19, %20 : vector<128x1xf32>
    %c0_11 = arith.constant 0 : index
    %c1 = arith.constant 1 : index
    %22 = vector.load %arg3[%c0_11, %c1] : memref<128x2xf32, #tpu.memory_space<vmem>>, vector<128x1xf32>
    %23 = arith.mulf %12, %21 : vector<128x1xf32>
    %24 = arith.subf %22, %23 : vector<128x1xf32>
    %25 = vector.broadcast %21 : vector<128x1xf32> to vector<128x49xf32>
    %26 = arith.mulf %5, %25 : vector<128x49xf32>
    %27 = vector.broadcast %24 : vector<128x1xf32> to vector<128x49xf32>
    %28 = arith.addf %26, %27 : vector<128x49xf32>
    %c0_12 = arith.constant 0 : index
    %c0_13 = arith.constant 0 : index
    %29 = vector.load %arg4[%c0_12, %c0_13] : memref<128x49xf32, #tpu.memory_space<vmem>>, vector<128x49xf32>
    tpu.vector_store %arg4[%c0_12, %c0_13], %28 {strides = array<i32>} : memref<128x49xf32, #tpu.memory_space<vmem>>, vector<128x49xf32>,
    return
  }
  func.func @transform_0(%arg0: i32) -> (i32, i32) {
    %c0_i32 = arith.constant 0 : i32
    %c0_i32_0 = arith.constant 0 : i32
    %c0_i32_1 = arith.constant 0 : i32
    return %c0_i32, %c0_i32_0 : i32, i32
  }
  func.func @transform_1(%arg0: i32) -> (i32, i32) {
    %c0_i32 = arith.constant 0 : i32
    %c0_i32_0 = arith.constant 0 : i32
    %c0_i32_1 = arith.constant 0 : i32
    return %c0_i32, %c0_i32_0 : i32, i32
  }
  func.func @transform_2(%arg0: i32) -> (i32, i32) {
    %c0_i32 = arith.constant 0 : i32
    %c0_i32_0 = arith.constant 0 : i32
    %c0_i32_1 = arith.constant 0 : i32
    return %c0_i32, %c0_i32_0 : i32, i32
  }
  func.func @transform_3(%arg0: i32) -> (i32, i32) {
    %c0_i32 = arith.constant 0 : i32
    %c0_i32_0 = arith.constant 0 : i32
    %c0_i32_1 = arith.constant 0 : i32
    return %c0_i32, %c0_i32_0 : i32, i32
  }
}

</mosaic_0001>

<llo_original>
// kernel: tpu_custom_call.1
$region0: #{tpu_custom_call.1}
  #allocation0 [shape = 'u32[]', space=smem, size = 0x4, offset = 0x4, fixed_abs, tag = 'smem constant byte address 0x4 - core index']
  #allocation1 [shape = 'u32[72,128]{1,0:T(1,128)}', space=vmem, size = 0x9000, scoped, tag = 'internal scratch']
  %s0 = inlined_call_operand.vmem [shape: f32[1024,49], index: 0, kind: input, shape index: {}]
  %s1 = inlined_call_operand.vmem [shape: bf16[128,1024], index: 1, kind: input, shape index: {}]
  %s2 = inlined_call_operand.vmem [shape: f32[128,2], index: 2, kind: input, shape index: {}]
  %s3 = inlined_call_operand.vmem [shape: f32[128,49], index: 3, kind: output, shape index: {}]
  %s4 = sld [smem:[#allocation0]]
  $region22: #{tpu_custom_call.1} parent=0
    _
  %s6 = ssub.s32 1, %s4
  %s7 = scalar_select 0, %s6, %s4
  // Predicated region
  $region2: #{tpu_custom_call.1} parent=0 // pred_check
    _
  $region3: #{tpu_custom_call.1} parent=0 // pred_check_branch
    %9 = sbr.rel (0) target = $region5
  $region4: #{tpu_custom_call.1} parent=0 // pred_region
    _
  $region5: #{tpu_custom_call.1} parent=0 // pred_fallthru
    _
  // Predicated region
  $region6: #{tpu_custom_call.1} parent=0 // pred_check
    _
  $region7: #{tpu_custom_call.1} parent=0 // pred_check_branch
    %11 = sbr.rel (0) target = $region9
  $region8: #{tpu_custom_call.1} parent=0 // pred_region
    _
  $region9: #{tpu_custom_call.1} parent=0 // pred_fallthru
    _
  // Predicated region
  $region10: #{tpu_custom_call.1} parent=0 // pred_check
    _
  $region11: #{tpu_custom_call.1} parent=0 // pred_check_branch
    %13 = sbr.rel (0) target = $region13
  $region12: #{tpu_custom_call.1} parent=0 // pred_region
    _
  $region13: #{tpu_custom_call.1} parent=0 // pred_fallthru
    _
  %v14 = vld [vmem:[%s0] sm:$0xff]
  %v15 = vld [vmem:[%s0 + $0x8] sm:$0xff]
  %v16 = vld [vmem:[%s0 + $0x10] sm:$0xff]
  %v17 = vld [vmem:[%s0 + $0x18] sm:$0xff]
  %v18 = vld [vmem:[%s0 + $0x20] sm:$0xff]
  %v19 = vld [vmem:[%s0 + $0x28] sm:$0xff]
  %v20 = vld [vmem:[%s0 + $0x30] sm:$0xff]
  %v21 = vld [vmem:[%s0 + $0x38] sm:$0xff]
  %v22 = vld [vmem:[%s0 + $0x40] sm:$0xff]
  %v23 = vld [vmem:[%s0 + $0x48] sm:$0xff]
  %v24 = vld [vmem:[%s0 + $0x50] sm:$0xff]
  %v25 = vld [vmem:[%s0 + $0x58] sm:$0xff]
  %v26 = vld [vmem:[%s0 + $0x60] sm:$0xff]
  %v27 = vld [vmem:[%s0 + $0x68] sm:$0xff]
  %v28 = vld [vmem:[%s0 + $0x70] sm:$0xff]
  %v29 = vld [vmem:[%s0 + $0x78] sm:$0xff]
  %v30 = vld [vmem:[%s0 + $0x80] sm:$0xff]
  %v31 = vld [vmem:[%s0 + $0x88] sm:$0xff]
  %v32 = vld [vmem:[%s0 + $0x90] sm:$0xff]
  %v33 = vld [vmem:[%s0 + $0x98] sm:$0xff]
  %v34 = vld [vmem:[%s0 + $0xa0] sm:$0xff]
  %v35 = vld [vmem:[%s0 + $0xa8] sm:$0xff]
  %v36 = vld [vmem:[%s0 + $0xb0] sm:$0xff]
  %v37 = vld [vmem:[%s0 + $0xb8] sm:$0xff]
  %v38 = vld [vmem:[%s0 + $0xc0] sm:$0xff]
  %v39 = vld [vmem:[%s0 + $0xc8] sm:$0xff]
  %v40 = vld [vmem:[%s0 + $0xd0] sm:$0xff]
  %v41 = vld [vmem:[%s0 + $0xd8] sm:$0xff]
  %v42 = vld [vmem:[%s0 + $0xe0] sm:$0xff]
  %v43 = vld [vmem:[%s0 + $0xe8] sm:$0xff]
  %v44 = vld [vmem:[%s0 + $0xf0] sm:$0xff]
  %v45 = vld [vmem:[%s0 + $0xf8] sm:$0xff]
  %v46 = vld [vmem:[%s0 + $0x100] sm:$0xff]
  %v47 = vld [vmem:[%s0 + $0x108] sm:$0xff]
  %v48 = vld [vmem:[%s0 + $0x110] sm:$0xff]
  %v49 = vld [vmem:[%s0 + $0x118] sm:$0xff]
  %v50 = vld [vmem:[%s0 + $0x120] sm:$0xff]
  %v51 = vld [vmem:[%s0 + $0x128] sm:$0xff]
  %v52 = vld [vmem:[%s0 + $0x130] sm:$0xff]
  %v53 = vld [vmem:[%s0 + $0x138] sm:$0xff]
  %v54 = vld [vmem:[%s0 + $0x140] sm:$0xff]
  %v55 = vld [vmem:[%s0 + $0x148] sm:$0xff]
  %v56 = vld [vmem:[%s0 + $0x150] sm:$0xff]
  %v57 = vld [vmem:[%s0 + $0x158] sm:$0xff]
  %v58 = vld [vmem:[%s0 + $0x160] sm:$0xff]
  %v59 = vld [vmem:[%s0 + $0x168] sm:$0xff]
  %v60 = vld [vmem:[%s0 + $0x170] sm:$0xff]
  %v61 = vld [vmem:[%s0 + $0x178] sm:$0xff]
  %v62 = vld [vmem:[%s0 + $0x180] sm:$0xff]
  %v63 = vld [vmem:[%s0 + $0x188] sm:$0xff]
  %v64 = vld [vmem:[%s0 + $0x190] sm:$0xff]
  %v65 = vld [vmem:[%s0 + $0x198] sm:$0xff]
  %v66 = vld [vmem:[%s0 + $0x1a0] sm:$0xff]
  %v67 = vld [vmem:[%s0 + $0x1a8] sm:$0xff]
  %v68 = vld [vmem:[%s0 + $0x1b0] sm:$0xff]
  %v69 = vld [vmem:[%s0 + $0x1b8] sm:$0xff]
  %v70 = vld [vmem:[%s0 + $0x1c0] sm:$0xff]
  %v71 = vld [vmem:[%s0 + $0x1c8] sm:$0xff]
  %v72 = vld [vmem:[%s0 + $0x1d0] sm:$0xff]
  %v73 = vld [vmem:[%s0 + $0x1d8] sm:$0xff]
  %v74 = vld [vmem:[%s0 + $0x1e0] sm:$0xff]
  %v75 = vld [vmem:[%s0 + $0x1e8] sm:$0xff]
  %v76 = vld [vmem:[%s0 + $0x1f0] sm:$0xff]
  %v77 = vld [vmem:[%s0 + $0x1f8] sm:$0xff]
  %v78 = vld [vmem:[%s0 + $0x200] sm:$0xff]
  %v79 = vld [vmem:[%s0 + $0x208] sm:$0xff]
  %v80 = vld [vmem:[%s0 + $0x210] sm:$0xff]
  %v81 = vld [vmem:[%s0 + $0x218] sm:$0xff]
  %v82 = vld [vmem:[%s0 + $0x220] sm:$0xff]
  %v83 = vld [vmem:[%s0 + $0x228] sm:$0xff]
  %v84 = vld [vmem:[%s0 + $0x230] sm:$0xff]
  %v85 = vld [vmem:[%s0 + $0x238] sm:$0xff]
  %v86 = vld [vmem:[%s0 + $0x240] sm:$0xff]
  %v87 = vld [vmem:[%s0 + $0x248] sm:$0xff]
  %v88 = vld [vmem:[%s0 + $0x250] sm:$0xff]
  %v89 = vld [vmem:[%s0 + $0x258] sm:$0xff]
  %v90 = vld [vmem:[%s0 + $0x260] sm:$0xff]
  %v91 = vld [vmem:[%s0 + $0x268] sm:$0xff]
  %v92 = vld [vmem:[%s0 + $0x270] sm:$0xff]
  %v93 = vld [vmem:[%s0 + $0x278] sm:$0xff]
  %v94 = vld [vmem:[%s0 + $0x280] sm:$0xff]
  %v95 = vld [vmem:[%s0 + $0x288] sm:$0xff]
  %v96 = vld [vmem:[%s0 + $0x290] sm:$0xff]
  %v97 = vld [vmem:[%s0 + $0x298] sm:$0xff]
  %v98 = vld [vmem:[%s0 + $0x2a0] sm:$0xff]
  %v99 = vld [vmem:[%s0 + $0x2a8] sm:$0xff]
  %v100 = vld [vmem:[%s0 + $0x2b0] sm:$0xff]
  %v101 = vld [vmem:[%s0 + $0x2b8] sm:$0xff]
  %v102 = vld [vmem:[%s0 + $0x2c0] sm:$0xff]
  %v103 = vld [vmem:[%s0 + $0x2c8] sm:$0xff]
  %v104 = vld [vmem:[%s0 + $0x2d0] sm:$0xff]
  %v105 = vld [vmem:[%s0 + $0x2d8] sm:$0xff]
  %v106 = vld [vmem:[%s0 + $0x2e0] sm:$0xff]
  %v107 = vld [vmem:[%s0 + $0x2e8] sm:$0xff]
  %v108 = vld [vmem:[%s0 + $0x2f0] sm:$0xff]
  %v109 = vld [vmem:[%s0 + $0x2f8] sm:$0xff]
  %v110 = vld [vmem:[%s0 + $0x300] sm:$0xff]
  %v111 = vld [vmem:[%s0 + $0x308] sm:$0xff]
  %v112 = vld [vmem:[%s0 + $0x310] sm:$0xff]
  %v113 = vld [vmem:[%s0 + $0x318] sm:$0xff]
  %v114 = vld [vmem:[%s0 + $0x320] sm:$0xff]
  %v115 = vld [vmem:[%s0 + $0x328] sm:$0xff]
  %v116 = vld [vmem:[%s0 + $0x330] sm:$0xff]
  %v117 = vld [vmem:[%s0 + $0x338] sm:$0xff]
  %v118 = vld [vmem:[%s0 + $0x340] sm:$0xff]
  %v119 = vld [vmem:[%s0 + $0x348] sm:$0xff]
  %v120 = vld [vmem:[%s0 + $0x350] sm:$0xff]
  %v121 = vld [vmem:[%s0 + $0x358] sm:$0xff]
  %v122 = vld [vmem:[%s0 + $0x360] sm:$0xff]
  %v123 = vld [vmem:[%s0 + $0x368] sm:$0xff]
  %v124 = vld [vmem:[%s0 + $0x370] sm:$0xff]
  %v125 = vld [vmem:[%s0 + $0x378] sm:$0xff]
  %v126 = vld [vmem:[%s0 + $0x380] sm:$0xff]
  %v127 = vld [vmem:[%s0 + $0x388] sm:$0xff]
  %v128 = vld [vmem:[%s0 + $0x390] sm:$0xff]
  %v129 = vld [vmem:[%s0 + $0x398] sm:$0xff]
  %v130 = vld [vmem:[%s0 + $0x3a0] sm:$0xff]
  %v131 = vld [vmem:[%s0 + $0x3a8] sm:$0xff]
  %v132 = vld [vmem:[%s0 + $0x3b0] sm:$0xff]
  %v133 = vld [vmem:[%s0 + $0x3b8] sm:$0xff]
  %v134 = vld [vmem:[%s0 + $0x3c0] sm:$0xff]
  %v135 = vld [vmem:[%s0 + $0x3c8] sm:$0xff]
  %v136 = vld [vmem:[%s0 + $0x3d0] sm:$0xff]
  %v137 = vld [vmem:[%s0 + $0x3d8] sm:$0xff]
  %v138 = vld [vmem:[%s0 + $0x3e0] sm:$0xff]
  %v139 = vld [vmem:[%s0 + $0x3e8] sm:$0xff]
  %v140 = vld [vmem:[%s0 + $0x3f0] sm:$0xff]
  %v141 = vld [vmem:[%s0 + $0x3f8] sm:$0xff]
  %v142 = vmax.f32 %v14, 0.0
  %v143 = vmax.f32 %v15, 0.0
  %v144 = vmax.f32 %v16, 0.0
  %v145 = vmax.f32 %v17, 0.0
  %v146 = vmax.f32 %v18, 0.0
  %v147 = vmax.f32 %v19, 0.0
  %v148 = vmax.f32 %v20, 0.0
  %v149 = vmax.f32 %v21, 0.0
  %v150 = vmax.f32 %v22, 0.0
  %v151 = vmax.f32 %v23, 0.0
  %v152 = vmax.f32 %v24, 0.0
  %v153 = vmax.f32 %v25, 0.0
  %v154 = vmax.f32 %v26, 0.0
  %v155 = vmax.f32 %v27, 0.0
  %v156 = vmax.f32 %v28, 0.0
  %v157 = vmax.f32 %v29, 0.0
  %v158 = vmax.f32 %v30, 0.0
  %v159 = vmax.f32 %v31, 0.0
  %v160 = vmax.f32 %v32, 0.0
  %v161 = vmax.f32 %v33, 0.0
  %v162 = vmax.f32 %v34, 0.0
  %v163 = vmax.f32 %v35, 0.0
  %v164 = vmax.f32 %v36, 0.0
  %v165 = vmax.f32 %v37, 0.0
  %v166 = vmax.f32 %v38, 0.0
  %v167 = vmax.f32 %v39, 0.0
  %v168 = vmax.f32 %v40, 0.0
  %v169 = vmax.f32 %v41, 0.0
  %v170 = vmax.f32 %v42, 0.0
  %v171 = vmax.f32 %v43, 0.0
  %v172 = vmax.f32 %v44, 0.0
  %v173 = vmax.f32 %v45, 0.0
  %v174 = vmax.f32 %v46, 0.0
  %v175 = vmax.f32 %v47, 0.0
  %v176 = vmax.f32 %v48, 0.0
  %v177 = vmax.f32 %v49, 0.0
  %v178 = vmax.f32 %v50, 0.0
  %v179 = vmax.f32 %v51, 0.0
  %v180 = vmax.f32 %v52, 0.0
  %v181 = vmax.f32 %v53, 0.0
  %v182 = vmax.f32 %v54, 0.0
  %v183 = vmax.f32 %v55, 0.0
  %v184 = vmax.f32 %v56, 0.0
  %v185 = vmax.f32 %v57, 0.0
  %v186 = vmax.f32 %v58, 0.0
  %v187 = vmax.f32 %v59, 0.0
  %v188 = vmax.f32 %v60, 0.0
  %v189 = vmax.f32 %v61, 0.0
  %v190 = vmax.f32 %v62, 0.0
  %v191 = vmax.f32 %v63, 0.0
  %v192 = vmax.f32 %v64, 0.0
  %v193 = vmax.f32 %v65, 0.0
  %v194 = vmax.f32 %v66, 0.0
  %v195 = vmax.f32 %v67, 0.0
  %v196 = vmax.f32 %v68, 0.0
  %v197 = vmax.f32 %v69, 0.0
  %v198 = vmax.f32 %v70, 0.0
  %v199 = vmax.f32 %v71, 0.0
  %v200 = vmax.f32 %v72, 0.0
  %v201 = vmax.f32 %v73, 0.0
  %v202 = vmax.f32 %v74, 0.0
  %v203 = vmax.f32 %v75, 0.0
  %v204 = vmax.f32 %v76, 0.0
  %v205 = vmax.f32 %v77, 0.0
  %v206 = vmax.f32 %v78, 0.0
  %v207 = vmax.f32 %v79, 0.0
  %v208 = vmax.f32 %v80, 0.0
  %v209 = vmax.f32 %v81, 0.0
  %v210 = vmax.f32 %v82, 0.0
  %v211 = vmax.f32 %v83, 0.0
  %v212 = vmax.f32 %v84, 0.0
  %v213 = vmax.f32 %v85, 0.0
  %v214 = vmax.f32 %v86, 0.0
  %v215 = vmax.f32 %v87, 0.0
  %v216 = vmax.f32 %v88, 0.0
  %v217 = vmax.f32 %v89, 0.0
  %v218 = vmax.f32 %v90, 0.0
  %v219 = vmax.f32 %v91, 0.0
  %v220 = vmax.f32 %v92, 0.0
  %v221 = vmax.f32 %v93, 0.0
  %v222 = vmax.f32 %v94, 0.0
  %v223 = vmax.f32 %v95, 0.0
  %v224 = vmax.f32 %v96, 0.0
  %v225 = vmax.f32 %v97, 0.0
  %v226 = vmax.f32 %v98, 0.0
  %v227 = vmax.f32 %v99, 0.0
  %v228 = vmax.f32 %v100, 0.0
  %v229 = vmax.f32 %v101, 0.0
  %v230 = vmax.f32 %v102, 0.0
  %v231 = vmax.f32 %v103, 0.0
  %v232 = vmax.f32 %v104, 0.0
  %v233 = vmax.f32 %v105, 0.0
  %v234 = vmax.f32 %v106, 0.0
  %v235 = vmax.f32 %v107, 0.0
  %v236 = vmax.f32 %v108, 0.0
  %v237 = vmax.f32 %v109, 0.0
  %v238 = vmax.f32 %v110, 0.0
  %v239 = vmax.f32 %v111, 0.0
  %v240 = vmax.f32 %v112, 0.0
  %v241 = vmax.f32 %v113, 0.0
  %v242 = vmax.f32 %v114, 0.0
  %v243 = vmax.f32 %v115, 0.0
  %v244 = vmax.f32 %v116, 0.0
  %v245 = vmax.f32 %v117, 0.0
  %v246 = vmax.f32 %v118, 0.0
  %v247 = vmax.f32 %v119, 0.0
  %v248 = vmax.f32 %v120, 0.0
  %v249 = vmax.f32 %v121, 0.0
  %v250 = vmax.f32 %v122, 0.0
  %v251 = vmax.f32 %v123, 0.0
  %v252 = vmax.f32 %v124, 0.0
  %v253 = vmax.f32 %v125, 0.0
  %v254 = vmax.f32 %v126, 0.0
  %v255 = vmax.f32 %v127, 0.0
  %v256 = vmax.f32 %v128, 0.0
  %v257 = vmax.f32 %v129, 0.0
  %v258 = vmax.f32 %v130, 0.0
  %v259 = vmax.f32 %v131, 0.0
  %v260 = vmax.f32 %v132, 0.0
  %v261 = vmax.f32 %v133, 0.0
  %v262 = vmax.f32 %v134, 0.0
  %v263 = vmax.f32 %v135, 0.0
  %v264 = vmax.f32 %v136, 0.0
  %v265 = vmax.f32 %v137, 0.0
  %v266 = vmax.f32 %v138, 0.0
  %v267 = vmax.f32 %v139, 0.0
  %v268 = vmax.f32 %v140, 0.0
  %v269 = vmax.f32 %v141, 0.0
  %v270 = vld [vmem:[%s1] sm:$0xff]
  %v271 = vld [vmem:[%s1 + $0x8] sm:$0xff]
  %v272 = vld [vmem:[%s1 + $0x10] sm:$0xff]
  %v273 = vld [vmem:[%s1 + $0x18] sm:$0xff]
  %v274 = vld [vmem:[%s1 + $0x20] sm:$0xff]
  %v275 = vld [vmem:[%s1 + $0x28] sm:$0xff]
  %v276 = vld [vmem:[%s1 + $0x30] sm:$0xff]
  %v277 = vld [vmem:[%s1 + $0x38] sm:$0xff]
  %v278 = vld [vmem:[%s1 + $0x40] sm:$0xff]
  %v279 = vld [vmem:[%s1 + $0x48] sm:$0xff]
  %v280 = vld [vmem:[%s1 + $0x50] sm:$0xff]
  %v281 = vld [vmem:[%s1 + $0x58] sm:$0xff]
  %v282 = vld [vmem:[%s1 + $0x60] sm:$0xff]
  %v283 = vld [vmem:[%s1 + $0x68] sm:$0xff]
  %v284 = vld [vmem:[%s1 + $0x70] sm:$0xff]
  %v285 = vld [vmem:[%s1 + $0x78] sm:$0xff]
  %v286 = vld [vmem:[%s1 + $0x80] sm:$0xff]
  %v287 = vld [vmem:[%s1 + $0x88] sm:$0xff]
  %v288 = vld [vmem:[%s1 + $0x90] sm:$0xff]
  %v289 = vld [vmem:[%s1 + $0x98] sm:$0xff]
  %v290 = vld [vmem:[%s1 + $0xa0] sm:$0xff]
  %v291 = vld [vmem:[%s1 + $0xa8] sm:$0xff]
  %v292 = vld [vmem:[%s1 + $0xb0] sm:$0xff]
  %v293 = vld [vmem:[%s1 + $0xb8] sm:$0xff]
  %v294 = vld [vmem:[%s1 + $0xc0] sm:$0xff]
  %v295 = vld [vmem:[%s1 + $0xc8] sm:$0xff]
  %v296 = vld [vmem:[%s1 + $0xd0] sm:$0xff]
  %v297 = vld [vmem:[%s1 + $0xd8] sm:$0xff]
  %v298 = vld [vmem:[%s1 + $0xe0] sm:$0xff]
  %v299 = vld [vmem:[%s1 + $0xe8] sm:$0xff]
  %v300 = vld [vmem:[%s1 + $0xf0] sm:$0xff]
  %v301 = vld [vmem:[%s1 + $0xf8] sm:$0xff]
  %v302 = vld [vmem:[%s1 + $0x100] sm:$0xff]
  %v303 = vld [vmem:[%s1 + $0x108] sm:$0xff]
  %v304 = vld [vmem:[%s1 + $0x110] sm:$0xff]
  %v305 = vld [vmem:[%s1 + $0x118] sm:$0xff]
  %v306 = vld [vmem:[%s1 + $0x120] sm:$0xff]
  %v307 = vld [vmem:[%s1 + $0x128] sm:$0xff]
  %v308 = vld [vmem:[%s1 + $0x130] sm:$0xff]
  %v309 = vld [vmem:[%s1 + $0x138] sm:$0xff]
  %v310 = vld [vmem:[%s1 + $0x140] sm:$0xff]
  %v311 = vld [vmem:[%s1 + $0x148] sm:$0xff]
  %v312 = vld [vmem:[%s1 + $0x150] sm:$0xff]
  %v313 = vld [vmem:[%s1 + $0x158] sm:$0xff]
  %v314 = vld [vmem:[%s1 + $0x160] sm:$0xff]
  %v315 = vld [vmem:[%s1 + $0x168] sm:$0xff]
  %v316 = vld [vmem:[%s1 + $0x170] sm:$0xff]
  %v317 = vld [vmem:[%s1 + $0x178] sm:$0xff]
  %v318 = vld [vmem:[%s1 + $0x180] sm:$0xff]
  %v319 = vld [vmem:[%s1 + $0x188] sm:$0xff]
  %v320 = vld [vmem:[%s1 + $0x190] sm:$0xff]
  %v321 = vld [vmem:[%s1 + $0x198] sm:$0xff]
  %v322 = vld [vmem:[%s1 + $0x1a0] sm:$0xff]
  %v323 = vld [vmem:[%s1 + $0x1a8] sm:$0xff]
  %v324 = vld [vmem:[%s1 + $0x1b0] sm:$0xff]
  %v325 = vld [vmem:[%s1 + $0x1b8] sm:$0xff]
  %v326 = vld [vmem:[%s1 + $0x1c0] sm:$0xff]
  %v327 = vld [vmem:[%s1 + $0x1c8] sm:$0xff]
  %v328 = vld [vmem:[%s1 + $0x1d0] sm:$0xff]
  %v329 = vld [vmem:[%s1 + $0x1d8] sm:$0xff]
  %v330 = vld [vmem:[%s1 + $0x1e0] sm:$0xff]
  %v331 = vld [vmem:[%s1 + $0x1e8] sm:$0xff]
  %v332 = vld [vmem:[%s1 + $0x1f0] sm:$0xff]
  %v333 = vld [vmem:[%s1 + $0x1f8] sm:$0xff]
  %v334 = vpack.c.bf16 %v143, %v142
  %v335 = vpack.c.bf16 %v145, %v144
  %v336 = vpack.c.bf16 %v147, %v146
  %v337 = vpack.c.bf16 %v149, %v148
  %v338 = vpack.c.bf16 %v151, %v150
  %v339 = vpack.c.bf16 %v153, %v152
  %v340 = vpack.c.bf16 %v155, %v154
  %v341 = vpack.c.bf16 %v157, %v156
  %v342 = vpack.c.bf16 %v159, %v158
  %v343 = vpack.c.bf16 %v161, %v160
  %v344 = vpack.c.bf16 %v163, %v162
  %v345 = vpack.c.bf16 %v165, %v164
  %v346 = vpack.c.bf16 %v167, %v166
  %v347 = vpack.c.bf16 %v169, %v168
  %v348 = vpack.c.bf16 %v171, %v170
  %v349 = vpack.c.bf16 %v173, %v172
  %v350 = vpack.c.bf16 %v175, %v174
  %v351 = vpack.c.bf16 %v177, %v176
  %v352 = vpack.c.bf16 %v179, %v178
  %v353 = vpack.c.bf16 %v181, %v180
  %v354 = vpack.c.bf16 %v183, %v182
  %v355 = vpack.c.bf16 %v185, %v184
  %v356 = vpack.c.bf16 %v187, %v186
  %v357 = vpack.c.bf16 %v189, %v188
  %v358 = vpack.c.bf16 %v191, %v190
  %v359 = vpack.c.bf16 %v193, %v192
  %v360 = vpack.c.bf16 %v195, %v194
  %v361 = vpack.c.bf16 %v197, %v196
  %v362 = vpack.c.bf16 %v199, %v198
  %v363 = vpack.c.bf16 %v201, %v200
  %v364 = vpack.c.bf16 %v203, %v202
  %v365 = vpack.c.bf16 %v205, %v204
  %v366 = vpack.c.bf16 %v207, %v206
  %v367 = vpack.c.bf16 %v209, %v208
  %v368 = vpack.c.bf16 %v211, %v210
  %v369 = vpack.c.bf16 %v213, %v212
  %v370 = vpack.c.bf16 %v215, %v214
  %v371 = vpack.c.bf16 %v217, %v216
  %v372 = vpack.c.bf16 %v219, %v218
  %v373 = vpack.c.bf16 %v221, %v220
  %v374 = vpack.c.bf16 %v223, %v222
  %v375 = vpack.c.bf16 %v225, %v224
  %v376 = vpack.c.bf16 %v227, %v226
  %v377 = vpack.c.bf16 %v229, %v228
  %v378 = vpack.c.bf16 %v231, %v230
  %v379 = vpack.c.bf16 %v233, %v232
  %v380 = vpack.c.bf16 %v235, %v234
  %v381 = vpack.c.bf16 %v237, %v236
  %v382 = vpack.c.bf16 %v239, %v238
  %v383 = vpack.c.bf16 %v241, %v240
  %v384 = vpack.c.bf16 %v243, %v242
  %v385 = vpack.c.bf16 %v245, %v244
  %v386 = vpack.c.bf16 %v247, %v246
  %v387 = vpack.c.bf16 %v249, %v248
  %v388 = vpack.c.bf16 %v251, %v250
  %v389 = vpack.c.bf16 %v253, %v252
  %v390 = vpack.c.bf16 %v255, %v254
  %v391 = vpack.c.bf16 %v257, %v256
  %v392 = vpack.c.bf16 %v259, %v258
  %v393 = vpack.c.bf16 %v261, %v260
  %v394 = vpack.c.bf16 %v263, %v262
  %v395 = vpack.c.bf16 %v265, %v264
  %v396 = vpack.c.bf16 %v267, %v266
  %v397 = vpack.c.bf16 %v269, %v268
  %v462 = vunpack.c.l.b16 %v270
  %v463 = vunpack.c.h.b16 %v270
  %v464 = vunpack.c.l.b16 %v271
  %v465 = vunpack.c.h.b16 %v271
  %v466 = vunpack.c.l.b16 %v272
  %v467 = vunpack.c.h.b16 %v272
  %v468 = vunpack.c.l.b16 %v273
  %v469 = vunpack.c.h.b16 %v273
  %v470 = vunpack.c.l.b16 %v274
  %v471 = vunpack.c.h.b16 %v274
  %v472 = vunpack.c.l.b16 %v275
  %v473 = vunpack.c.h.b16 %v275
  %v474 = vunpack.c.l.b16 %v276
  %v475 = vunpack.c.h.b16 %v276
  %v476 = vunpack.c.l.b16 %v277
  %v477 = vunpack.c.h.b16 %v277
  %v478 = vunpack.c.l.b16 %v278
  %v479 = vunpack.c.h.b16 %v278
  %v480 = vunpack.c.l.b16 %v279
  %v481 = vunpack.c.h.b16 %v279
  %v482 = vunpack.c.l.b16 %v280
  %v483 = vunpack.c.h.b16 %v280
  %v484 = vunpack.c.l.b16 %v281
  %v485 = vunpack.c.h.b16 %v281
  %v486 = vunpack.c.l.b16 %v282
  %v487 = vunpack.c.h.b16 %v282
  %v488 = vunpack.c.l.b16 %v283
  %v489 = vunpack.c.h.b16 %v283
  %v490 = vunpack.c.l.b16 %v284
  %v491 = vunpack.c.h.b16 %v284
  %v492 = vunpack.c.l.b16 %v285
  %v493 = vunpack.c.h.b16 %v285
  %v494 = vunpack.c.l.b16 %v286
  %v495 = vunpack.c.h.b16 %v286
  %v496 = vunpack.c.l.b16 %v287
  %v497 = vunpack.c.h.b16 %v287
  %v498 = vunpack.c.l.b16 %v288
  %v499 = vunpack.c.h.b16 %v288
  %v500 = vunpack.c.l.b16 %v289
  %v501 = vunpack.c.h.b16 %v289
  %v502 = vunpack.c.l.b16 %v290
  %v503 = vunpack.c.h.b16 %v290
  %v504 = vunpack.c.l.b16 %v291
  %v505 = vunpack.c.h.b16 %v291
  %v506 = vunpack.c.l.b16 %v292
  %v507 = vunpack.c.h.b16 %v292
  %v508 = vunpack.c.l.b16 %v293
  %v509 = vunpack.c.h.b16 %v293
  %v510 = vunpack.c.l.b16 %v294
  %v511 = vunpack.c.h.b16 %v294
  %v512 = vunpack.c.l.b16 %v295
  %v513 = vunpack.c.h.b16 %v295
  %v514 = vunpack.c.l.b16 %v296
  %v515 = vunpack.c.h.b16 %v296
  %v516 = vunpack.c.l.b16 %v297
  %v517 = vunpack.c.h.b16 %v297
  %v518 = vunpack.c.l.b16 %v298
  %v519 = vunpack.c.h.b16 %v298
  %v520 = vunpack.c.l.b16 %v299
  %v521 = vunpack.c.h.b16 %v299
  %v522 = vunpack.c.l.b16 %v300
  %v523 = vunpack.c.h.b16 %v300
  %v524 = vunpack.c.l.b16 %v301
  %v525 = vunpack.c.h.b16 %v301
  %v526 = vunpack.c.l.b16 %v302
  %v527 = vunpack.c.h.b16 %v302
  %v528 = vunpack.c.l.b16 %v303
  %v529 = vunpack.c.h.b16 %v303
  %v530 = vunpack.c.l.b16 %v304
  %v531 = vunpack.c.h.b16 %v304
  %v532 = vunpack.c.l.b16 %v305
  %v533 = vunpack.c.h.b16 %v305
  %v534 = vunpack.c.l.b16 %v306
  %v535 = vunpack.c.h.b16 %v306
  %v536 = vunpack.c.l.b16 %v307
  %v537 = vunpack.c.h.b16 %v307
  %v538 = vunpack.c.l.b16 %v308
  %v539 = vunpack.c.h.b16 %v308
  %v540 = vunpack.c.l.b16 %v309
  %v541 = vunpack.c.h.b16 %v309
  %v542 = vunpack.c.l.b16 %v310
  %v543 = vunpack.c.h.b16 %v310
  %v544 = vunpack.c.l.b16 %v311
  %v545 = vunpack.c.h.b16 %v311
  %v546 = vunpack.c.l.b16 %v312
  %v547 = vunpack.c.h.b16 %v312
  %v548 = vunpack.c.l.b16 %v313
  %v549 = vunpack.c.h.b16 %v313
  %v550 = vunpack.c.l.b16 %v314
  %v551 = vunpack.c.h.b16 %v314
  %v552 = vunpack.c.l.b16 %v315
  %v553 = vunpack.c.h.b16 %v315
  %v554 = vunpack.c.l.b16 %v316
  %v555 = vunpack.c.h.b16 %v316
  %v556 = vunpack.c.l.b16 %v317
  %v557 = vunpack.c.h.b16 %v317
  %v558 = vunpack.c.l.b16 %v318
  %v559 = vunpack.c.h.b16 %v318
  %v560 = vunpack.c.l.b16 %v319
  %v561 = vunpack.c.h.b16 %v319
  %v562 = vunpack.c.l.b16 %v320
  %v563 = vunpack.c.h.b16 %v320
  %v564 = vunpack.c.l.b16 %v321
  %v565 = vunpack.c.h.b16 %v321
  %v566 = vunpack.c.l.b16 %v322
  %v567 = vunpack.c.h.b16 %v322
  %v568 = vunpack.c.l.b16 %v323
  %v569 = vunpack.c.h.b16 %v323
  %v570 = vunpack.c.l.b16 %v324
  %v571 = vunpack.c.h.b16 %v324
  %v572 = vunpack.c.l.b16 %v325
  %v573 = vunpack.c.h.b16 %v325
  %v574 = vunpack.c.l.b16 %v326
  %v575 = vunpack.c.h.b16 %v326
  %v576 = vunpack.c.l.b16 %v327
  %v577 = vunpack.c.h.b16 %v327
  %v578 = vunpack.c.l.b16 %v328
  %v579 = vunpack.c.h.b16 %v328
  %v580 = vunpack.c.l.b16 %v329
  %v581 = vunpack.c.h.b16 %v329
  %v582 = vunpack.c.l.b16 %v330
  %v583 = vunpack.c.h.b16 %v330
  %v584 = vunpack.c.l.b16 %v331
  %v585 = vunpack.c.h.b16 %v331
  %v586 = vunpack.c.l.b16 %v332
  %v587 = vunpack.c.h.b16 %v332
  %v588 = vunpack.c.l.b16 %v333
  %v589 = vunpack.c.h.b16 %v333
  %v590 = vpack.c.b16 %v470, %v462
  %v591 = vpack.c.b16 %v471, %v463
  %v592 = vpack.c.b16 %v472, %v464
  %v593 = vpack.c.b16 %v473, %v465
  %v594 = vpack.c.b16 %v474, %v466
  %v595 = vpack.c.b16 %v475, %v467
  %v596 = vpack.c.b16 %v476, %v468
  %v597 = vpack.c.b16 %v477, %v469
  %v598 = vpack.c.b16 %v486, %v478
  %v599 = vpack.c.b16 %v487, %v479
  %v600 = vpack.c.b16 %v488, %v480
  %v601 = vpack.c.b16 %v489, %v481
  %v602 = vpack.c.b16 %v490, %v482
  %v603 = vpack.c.b16 %v491, %v483
  %v604 = vpack.c.b16 %v492, %v484
  %v605 = vpack.c.b16 %v493, %v485
  %v606 = vpack.c.b16 %v502, %v494
  %v607 = vpack.c.b16 %v503, %v495
  %v608 = vpack.c.b16 %v504, %v496
  %v609 = vpack.c.b16 %v505, %v497
  %v610 = vpack.c.b16 %v506, %v498
  %v611 = vpack.c.b16 %v507, %v499
  %v612 = vpack.c.b16 %v508, %v500
  %v613 = vpack.c.b16 %v509, %v501
  %v614 = vpack.c.b16 %v518, %v510
  %v615 = vpack.c.b16 %v519, %v511
  %v616 = vpack.c.b16 %v520, %v512
  %v617 = vpack.c.b16 %v521, %v513
  %v618 = vpack.c.b16 %v522, %v514
  %v619 = vpack.c.b16 %v523, %v515
  %v620 = vpack.c.b16 %v524, %v516
  %v621 = vpack.c.b16 %v525, %v517
  %v622 = vpack.c.b16 %v534, %v526
  %v623 = vpack.c.b16 %v535, %v527
  %v624 = vpack.c.b16 %v536, %v528
  %v625 = vpack.c.b16 %v537, %v529
  %v626 = vpack.c.b16 %v538, %v530
  %v627 = vpack.c.b16 %v539, %v531
  %v628 = vpack.c.b16 %v540, %v532
  %v629 = vpack.c.b16 %v541, %v533
  %v630 = vpack.c.b16 %v550, %v542
  %v631 = vpack.c.b16 %v551, %v543
  %v632 = vpack.c.b16 %v552, %v544
  %v633 = vpack.c.b16 %v553, %v545
  %v634 = vpack.c.b16 %v554, %v546
  %v635 = vpack.c.b16 %v555, %v547
  %v636 = vpack.c.b16 %v556, %v548
  %v637 = vpack.c.b16 %v557, %v549
  %v638 = vpack.c.b16 %v566, %v558
  %v639 = vpack.c.b16 %v567, %v559
  %v640 = vpack.c.b16 %v568, %v560
  %v641 = vpack.c.b16 %v569, %v561
  %v642 = vpack.c.b16 %v570, %v562
  %v643 = vpack.c.b16 %v571, %v563
  %v644 = vpack.c.b16 %v572, %v564
  %v645 = vpack.c.b16 %v573, %v565
  %v646 = vpack.c.b16 %v582, %v574
  %v647 = vpack.c.b16 %v583, %v575
  %v648 = vpack.c.b16 %v584, %v576
  %v649 = vpack.c.b16 %v585, %v577
  %v650 = vpack.c.b16 %v586, %v578
  %v651 = vpack.c.b16 %v587, %v579
  %v652 = vpack.c.b16 %v588, %v580
  %v653 = vpack.c.b16 %v589, %v581
  %718 = vmatpush.bf16.msra.mxu0 %v341
  %719 = vmatpush.bf16.msra.mxu0 %v340
  %720 = vmatpush.bf16.msra.mxu0 %v339
  %721 = vmatpush.bf16.msra.mxu0 %v338
  %722 = vmatpush.bf16.msra.mxu0 %v337
  %723 = vmatpush.bf16.msra.mxu0 %v336
  %724 = vmatpush.bf16.msra.mxu0 %v335
  %725 = vmatpush.bf16.msra.mxu0 %v334
  %726 = vmatmul.bf16.gmra.mxu0 %v590
  %v727 = vpop.f32.mrf.mxu0
  %v728 = vadd.f32 0.0, %v727
  %v729 = vpop.f32.mrf.mxu0
  %v730 = vadd.f32 0.0, %v729
  %731 = vmatmul.bf16.gmra.mxu0 %v598
  %v732 = vpop.f32.mrf.mxu0
  %v733 = vadd.f32 0.0, %v732
  %v734 = vpop.f32.mrf.mxu0
  %v735 = vadd.f32 0.0, %v734
  %736 = vmatmul.bf16.gmra.mxu0 %v606
  %v737 = vpop.f32.mrf.mxu0
  %v738 = vadd.f32 0.0, %v737
  %v739 = vpop.f32.mrf.mxu0
  %v740 = vadd.f32 0.0, %v739
  %741 = vmatmul.bf16.gmra.mxu0 %v614
  %v742 = vpop.f32.mrf.mxu0
  %v743 = vadd.f32 0.0, %v742
  %v744 = vpop.f32.mrf.mxu0
  %v745 = vadd.f32 0.0, %v744
  %746 = vmatmul.bf16.gmra.mxu0 %v622
  %v747 = vpop.f32.mrf.mxu0
  %v748 = vadd.f32 0.0, %v747
  %v749 = vpop.f32.mrf.mxu0
  %v750 = vadd.f32 0.0, %v749
  %751 = vmatmul.bf16.gmra.mxu0 %v630
  %v752 = vpop.f32.mrf.mxu0
  %v753 = vadd.f32 0.0, %v752
  %v754 = vpop.f32.mrf.mxu0
  %v755 = vadd.f32 0.0, %v754
  %756 = vmatmul.bf16.gmra.mxu0 %v638
  %v757 = vpop.f32.mrf.mxu0
  %v758 = vadd.f32 0.0, %v757
  %v759 = vpop.f32.mrf.mxu0
  %v760 = vadd.f32 0.0, %v759
  %761 = vmatmul.bf16.gmra.mxu0 %v646
  %v762 = vpop.f32.mrf.mxu0
  %v763 = vadd.f32 0.0, %v762
  %v764 = vpop.f32.mrf.mxu0
  %v765 = vadd.f32 0.0, %v764
  %766 = vdwg.mxu0
  %767 = vmatpush.bf16.msra.mxu0 %v349
  %768 = vmatpush.bf16.msra.mxu0 %v348
  %769 = vmatpush.bf16.msra.mxu0 %v347
  %770 = vmatpush.bf16.msra.mxu0 %v346
  %771 = vmatpush.bf16.msra.mxu0 %v345
  %772 = vmatpush.bf16.msra.mxu0 %v344
  %773 = vmatpush.bf16.msra.mxu0 %v343
  %774 = vmatpush.bf16.msra.mxu0 %v342
  %775 = vmatmul.bf16.gmra.mxu0 %v591
  %v776 = vpop.f32.mrf.mxu0
  %v777 = vadd.f32 %v728, %v776
  %v778 = vpop.f32.mrf.mxu0
  %v779 = vadd.f32 %v730, %v778
  %780 = vmatmul.bf16.gmra.mxu0 %v599
  %v781 = vpop.f32.mrf.mxu0
  %v782 = vadd.f32 %v733, %v781
  %v783 = vpop.f32.mrf.mxu0
  %v784 = vadd.f32 %v735, %v783
  %785 = vmatmul.bf16.gmra.mxu0 %v607
  %v786 = vpop.f32.mrf.mxu0
  %v787 = vadd.f32 %v738, %v786
  %v788 = vpop.f32.mrf.mxu0
  %v789 = vadd.f32 %v740, %v788
  %790 = vmatmul.bf16.gmra.mxu0 %v615
  %v791 = vpop.f32.mrf.mxu0
  %v792 = vadd.f32 %v743, %v791
  %v793 = vpop.f32.mrf.mxu0
  %v794 = vadd.f32 %v745, %v793
  %795 = vmatmul.bf16.gmra.mxu0 %v623
  %v796 = vpop.f32.mrf.mxu0
  %v797 = vadd.f32 %v748, %v796
  %v798 = vpop.f32.mrf.mxu0
  %v799 = vadd.f32 %v750, %v798
  %800 = vmatmul.bf16.gmra.mxu0 %v631
  %v801 = vpop.f32.mrf.mxu0
  %v802 = vadd.f32 %v753, %v801
  %v803 = vpop.f32.mrf.mxu0
  %v804 = vadd.f32 %v755, %v803
  %805 = vmatmul.bf16.gmra.mxu0 %v639
  %v806 = vpop.f32.mrf.mxu0
  %v807 = vadd.f32 %v758, %v806
  %v808 = vpop.f32.mrf.mxu0
  %v809 = vadd.f32 %v760, %v808
  %810 = vmatmul.bf16.gmra.mxu0 %v647
  %v811 = vpop.f32.mrf.mxu0
  %v812 = vadd.f32 %v763, %v811
  %v813 = vpop.f32.mrf.mxu0
  %v814 = vadd.f32 %v765, %v813
  %815 = vdwg.mxu0
  %816 = vmatpush.bf16.msra.mxu0 %v357
  %817 = vmatpush.bf16.msra.mxu0 %v356
  %818 = vmatpush.bf16.msra.mxu0 %v355
  %819 = vmatpush.bf16.msra.mxu0 %v354
  %820 = vmatpush.bf16.msra.mxu0 %v353
  %821 = vmatpush.bf16.msra.mxu0 %v352
  %822 = vmatpush.bf16.msra.mxu0 %v351
  %823 = vmatpush.bf16.msra.mxu0 %v350
  %824 = vmatmul.bf16.gmra.mxu0 %v592
  %v825 = vpop.f32.mrf.mxu0
  %v826 = vadd.f32 %v777, %v825
  %v827 = vpop.f32.mrf.mxu0
  %v828 = vadd.f32 %v779, %v827
  %829 = vmatmul.bf16.gmra.mxu0 %v600
  %v830 = vpop.f32.mrf.mxu0
  %v831 = vadd.f32 %v782, %v830
  %v832 = vpop.f32.mrf.mxu0
  %v833 = vadd.f32 %v784, %v832
  %834 = vmatmul.bf16.gmra.mxu0 %v608
  %v835 = vpop.f32.mrf.mxu0
  %v836 = vadd.f32 %v787, %v835
  %v837 = vpop.f32.mrf.mxu0
  %v838 = vadd.f32 %v789, %v837
  %839 = vmatmul.bf16.gmra.mxu0 %v616
  %v840 = vpop.f32.mrf.mxu0
  %v841 = vadd.f32 %v792, %v840
  %v842 = vpop.f32.mrf.mxu0
  %v843 = vadd.f32 %v794, %v842
  %844 = vmatmul.bf16.gmra.mxu0 %v624
  %v845 = vpop.f32.mrf.mxu0
  %v846 = vadd.f32 %v797, %v845
  %v847 = vpop.f32.mrf.mxu0
  %v848 = vadd.f32 %v799, %v847
  %849 = vmatmul.bf16.gmra.mxu0 %v632
  %v850 = vpop.f32.mrf.mxu0
  %v851 = vadd.f32 %v802, %v850
  %v852 = vpop.f32.mrf.mxu0
  %v853 = vadd.f32 %v804, %v852
  %854 = vmatmul.bf16.gmra.mxu0 %v640
  %v855 = vpop.f32.mrf.mxu0
  %v856 = vadd.f32 %v807, %v855
  %v857 = vpop.f32.mrf.mxu0
  %v858 = vadd.f32 %v809, %v857
  %859 = vmatmul.bf16.gmra.mxu0 %v648
  %v860 = vpop.f32.mrf.mxu0
  %v861 = vadd.f32 %v812, %v860
  %v862 = vpop.f32.mrf.mxu0
  %v863 = vadd.f32 %v814, %v862
  %864 = vdwg.mxu0
  %865 = vmatpush.bf16.msra.mxu0 %v365
  %866 = vmatpush.bf16.msra.mxu0 %v364
  %867 = vmatpush.bf16.msra.mxu0 %v363
  %868 = vmatpush.bf16.msra.mxu0 %v362
  %869 = vmatpush.bf16.msra.mxu0 %v361
  %870 = vmatpush.bf16.msra.mxu0 %v360
  %871 = vmatpush.bf16.msra.mxu0 %v359
  %872 = vmatpush.bf16.msra.mxu0 %v358
  %873 = vmatmul.bf16.gmra.mxu0 %v593
  %v874 = vpop.f32.mrf.mxu0
  %v875 = vadd.f32 %v826, %v874
  %v876 = vpop.f32.mrf.mxu0
  %v877 = vadd.f32 %v828, %v876
  %878 = vmatmul.bf16.gmra.mxu0 %v601
  %v879 = vpop.f32.mrf.mxu0
  %v880 = vadd.f32 %v831, %v879
  %v881 = vpop.f32.mrf.mxu0
  %v882 = vadd.f32 %v833, %v881
  %883 = vmatmul.bf16.gmra.mxu0 %v609
  %v884 = vpop.f32.mrf.mxu0
  %v885 = vadd.f32 %v836, %v884
  %v886 = vpop.f32.mrf.mxu0
  %v887 = vadd.f32 %v838, %v886
  %888 = vmatmul.bf16.gmra.mxu0 %v617
  %v889 = vpop.f32.mrf.mxu0
  %v890 = vadd.f32 %v841, %v889
  %v891 = vpop.f32.mrf.mxu0
  %v892 = vadd.f32 %v843, %v891
  %893 = vmatmul.bf16.gmra.mxu0 %v625
  %v894 = vpop.f32.mrf.mxu0
  %v895 = vadd.f32 %v846, %v894
  %v896 = vpop.f32.mrf.mxu0
  %v897 = vadd.f32 %v848, %v896
  %898 = vmatmul.bf16.gmra.mxu0 %v633
  %v899 = vpop.f32.mrf.mxu0
  %v900 = vadd.f32 %v851, %v899
  %v901 = vpop.f32.mrf.mxu0
  %v902 = vadd.f32 %v853, %v901
  %903 = vmatmul.bf16.gmra.mxu0 %v641
  %v904 = vpop.f32.mrf.mxu0
  %v905 = vadd.f32 %v856, %v904
  %v906 = vpop.f32.mrf.mxu0
  %v907 = vadd.f32 %v858, %v906
  %908 = vmatmul.bf16.gmra.mxu0 %v649
  %v909 = vpop.f32.mrf.mxu0
  %v910 = vadd.f32 %v861, %v909
  %v911 = vpop.f32.mrf.mxu0
  %v912 = vadd.f32 %v863, %v911
  %913 = vdwg.mxu0
  %914 = vmatpush.bf16.msra.mxu0 %v373
  %915 = vmatpush.bf16.msra.mxu0 %v372
  %916 = vmatpush.bf16.msra.mxu0 %v371
  %917 = vmatpush.bf16.msra.mxu0 %v370
  %918 = vmatpush.bf16.msra.mxu0 %v369
  %919 = vmatpush.bf16.msra.mxu0 %v368
  %920 = vmatpush.bf16.msra.mxu0 %v367
  %921 = vmatpush.bf16.msra.mxu0 %v366
  %922 = vmatmul.bf16.gmra.mxu0 %v594
  %v923 = vpop.f32.mrf.mxu0
  %v924 = vadd.f32 %v875, %v923
  %v925 = vpop.f32.mrf.mxu0
  %v926 = vadd.f32 %v877, %v925
  %927 = vmatmul.bf16.gmra.mxu0 %v602
  %v928 = vpop.f32.mrf.mxu0
  %v929 = vadd.f32 %v880, %v928
  %v930 = vpop.f32.mrf.mxu0
  %v931 = vadd.f32 %v882, %v930
  %932 = vmatmul.bf16.gmra.mxu0 %v610
  %v933 = vpop.f32.mrf.mxu0
  %v934 = vadd.f32 %v885, %v933
  %v935 = vpop.f32.mrf.mxu0
  %v936 = vadd.f32 %v887, %v935
  %937 = vmatmul.bf16.gmra.mxu0 %v618
  %v938 = vpop.f32.mrf.mxu0
  %v939 = vadd.f32 %v890, %v938
  %v940 = vpop.f32.mrf.mxu0
  %v941 = vadd.f32 %v892, %v940
  %942 = vmatmul.bf16.gmra.mxu0 %v626
  %v943 = vpop.f32.mrf.mxu0
  %v944 = vadd.f32 %v895, %v943
  %v945 = vpop.f32.mrf.mxu0
  %v946 = vadd.f32 %v897, %v945
  %947 = vmatmul.bf16.gmra.mxu0 %v634
  %v948 = vpop.f32.mrf.mxu0
  %v949 = vadd.f32 %v900, %v948
  %v950 = vpop.f32.mrf.mxu0
  %v951 = vadd.f32 %v902, %v950
  %952 = vmatmul.bf16.gmra.mxu0 %v642
  %v953 = vpop.f32.mrf.mxu0
  %v954 = vadd.f32 %v905, %v953
  %v955 = vpop.f32.mrf.mxu0
  %v956 = vadd.f32 %v907, %v955
  %957 = vmatmul.bf16.gmra.mxu0 %v650
  %v958 = vpop.f32.mrf.mxu0
  %v959 = vadd.f32 %v910, %v958
  %v960 = vpop.f32.mrf.mxu0
  %v961 = vadd.f32 %v912, %v960
  %962 = vdwg.mxu0
  %963 = vmatpush.bf16.msra.mxu0 %v381
  %964 = vmatpush.bf16.msra.mxu0 %v380
  %965 = vmatpush.bf16.msra.mxu0 %v379
  %966 = vmatpush.bf16.msra.mxu0 %v378
  %967 = vmatpush.bf16.msra.mxu0 %v377
  %968 = vmatpush.bf16.msra.mxu0 %v376
  %969 = vmatpush.bf16.msra.mxu0 %v375
  %970 = vmatpush.bf16.msra.mxu0 %v374
  %971 = vmatmul.bf16.gmra.mxu0 %v595
  %v972 = vpop.f32.mrf.mxu0
  %v973 = vadd.f32 %v924, %v972
  %v974 = vpop.f32.mrf.mxu0
  %v975 = vadd.f32 %v926, %v974
  %976 = vmatmul.bf16.gmra.mxu0 %v603
  %v977 = vpop.f32.mrf.mxu0
  %v978 = vadd.f32 %v929, %v977
  %v979 = vpop.f32.mrf.mxu0
  %v980 = vadd.f32 %v931, %v979
  %981 = vmatmul.bf16.gmra.mxu0 %v611
  %v982 = vpop.f32.mrf.mxu0
  %v983 = vadd.f32 %v934, %v982
  %v984 = vpop.f32.mrf.mxu0
  %v985 = vadd.f32 %v936, %v984
  %986 = vmatmul.bf16.gmra.mxu0 %v619
  %v987 = vpop.f32.mrf.mxu0
  %v988 = vadd.f32 %v939, %v987
  %v989 = vpop.f32.mrf.mxu0
  %v990 = vadd.f32 %v941, %v989
  %991 = vmatmul.bf16.gmra.mxu0 %v627
  %v992 = vpop.f32.mrf.mxu0
  %v993 = vadd.f32 %v944, %v992
  %v994 = vpop.f32.mrf.mxu0
  %v995 = vadd.f32 %v946, %v994
  %996 = vmatmul.bf16.gmra.mxu0 %v635
  %v997 = vpop.f32.mrf.mxu0
  %v998 = vadd.f32 %v949, %v997
  %v999 = vpop.f32.mrf.mxu0
  %v1000 = vadd.f32 %v951, %v999
  %1001 = vmatmul.bf16.gmra.mxu0 %v643
  %v1002 = vpop.f32.mrf.mxu0
  %v1003 = vadd.f32 %v954, %v1002
  %v1004 = vpop.f32.mrf.mxu0
  %v1005 = vadd.f32 %v956, %v1004
  %1006 = vmatmul.bf16.gmra.mxu0 %v651
  %v1007 = vpop.f32.mrf.mxu0
  %v1008 = vadd.f32 %v959, %v1007
  %v1009 = vpop.f32.mrf.mxu0
  %v1010 = vadd.f32 %v961, %v1009
  %1011 = vdwg.mxu0
  %1012 = vmatpush.bf16.msra.mxu0 %v389
  %1013 = vmatpush.bf16.msra.mxu0 %v388
  %1014 = vmatpush.bf16.msra.mxu0 %v387
  %1015 = vmatpush.bf16.msra.mxu0 %v386
  %1016 = vmatpush.bf16.msra.mxu0 %v385
  %1017 = vmatpush.bf16.msra.mxu0 %v384
  %1018 = vmatpush.bf16.msra.mxu0 %v383
  %1019 = vmatpush.bf16.msra.mxu0 %v382
  %1020 = vmatmul.bf16.gmra.mxu0 %v596
  %v1021 = vpop.f32.mrf.mxu0
  %v1022 = vadd.f32 %v973, %v1021
  %v1023 = vpop.f32.mrf.mxu0
  %v1024 = vadd.f32 %v975, %v1023
  %1025 = vmatmul.bf16.gmra.mxu0 %v604
  %v1026 = vpop.f32.mrf.mxu0
  %v1027 = vadd.f32 %v978, %v1026
  %v1028 = vpop.f32.mrf.mxu0
  %v1029 = vadd.f32 %v980, %v1028
  %1030 = vmatmul.bf16.gmra.mxu0 %v612
  %v1031 = vpop.f32.mrf.mxu0
  %v1032 = vadd.f32 %v983, %v1031
  %v1033 = vpop.f32.mrf.mxu0
  %v1034 = vadd.f32 %v985, %v1033
  %1035 = vmatmul.bf16.gmra.mxu0 %v620
  %v1036 = vpop.f32.mrf.mxu0
  %v1037 = vadd.f32 %v988, %v1036
  %v1038 = vpop.f32.mrf.mxu0
  %v1039 = vadd.f32 %v990, %v1038
  %1040 = vmatmul.bf16.gmra.mxu0 %v628
  %v1041 = vpop.f32.mrf.mxu0
  %v1042 = vadd.f32 %v993, %v1041
  %v1043 = vpop.f32.mrf.mxu0
  %v1044 = vadd.f32 %v995, %v1043
  %1045 = vmatmul.bf16.gmra.mxu0 %v636
  %v1046 = vpop.f32.mrf.mxu0
  %v1047 = vadd.f32 %v998, %v1046
  %v1048 = vpop.f32.mrf.mxu0
  %v1049 = vadd.f32 %v1000, %v1048
  %1050 = vmatmul.bf16.gmra.mxu0 %v644
  %v1051 = vpop.f32.mrf.mxu0
  %v1052 = vadd.f32 %v1003, %v1051
  %v1053 = vpop.f32.mrf.mxu0
  %v1054 = vadd.f32 %v1005, %v1053
  %1055 = vmatmul.bf16.gmra.mxu0 %v652
  %v1056 = vpop.f32.mrf.mxu0
  %v1057 = vadd.f32 %v1008, %v1056
  %v1058 = vpop.f32.mrf.mxu0
  %v1059 = vadd.f32 %v1010, %v1058
  %1060 = vdwg.mxu0
  %1061 = vmatpush.bf16.msra.mxu0 %v397
  %1062 = vmatpush.bf16.msra.mxu0 %v396
  %1063 = vmatpush.bf16.msra.mxu0 %v395
  %1064 = vmatpush.bf16.msra.mxu0 %v394
  %1065 = vmatpush.bf16.msra.mxu0 %v393
  %1066 = vmatpush.bf16.msra.mxu0 %v392
  %1067 = vmatpush.bf16.msra.mxu0 %v391
  %1068 = vmatpush.bf16.msra.mxu0 %v390
  %1069 = vmatmul.bf16.gmra.mxu0 %v597
  %v1070 = vpop.f32.mrf.mxu0
  %v1071 = vadd.f32 %v1022, %v1070
  %v1072 = vpop.f32.mrf.mxu0
  %v1073 = vadd.f32 %v1024, %v1072
  %1074 = vmatmul.bf16.gmra.mxu0 %v605
  %v1075 = vpop.f32.mrf.mxu0
  %v1076 = vadd.f32 %v1027, %v1075
  %v1077 = vpop.f32.mrf.mxu0
  %v1078 = vadd.f32 %v1029, %v1077
  %1079 = vmatmul.bf16.gmra.mxu0 %v613
  %v1080 = vpop.f32.mrf.mxu0
  %v1081 = vadd.f32 %v1032, %v1080
  %v1082 = vpop.f32.mrf.mxu0
  %v1083 = vadd.f32 %v1034, %v1082
  %1084 = vmatmul.bf16.gmra.mxu0 %v621
  %v1085 = vpop.f32.mrf.mxu0
  %v1086 = vadd.f32 %v1037, %v1085
  %v1087 = vpop.f32.mrf.mxu0
  %v1088 = vadd.f32 %v1039, %v1087
  %1089 = vmatmul.bf16.gmra.mxu0 %v629
  %v1090 = vpop.f32.mrf.mxu0
  %v1091 = vadd.f32 %v1042, %v1090
  %v1092 = vpop.f32.mrf.mxu0
  %v1093 = vadd.f32 %v1044, %v1092
  %1094 = vmatmul.bf16.gmra.mxu0 %v637
  %v1095 = vpop.f32.mrf.mxu0
  %v1096 = vadd.f32 %v1047, %v1095
  %v1097 = vpop.f32.mrf.mxu0
  %v1098 = vadd.f32 %v1049, %v1097
  %1099 = vmatmul.bf16.gmra.mxu0 %v645
  %v1100 = vpop.f32.mrf.mxu0
  %v1101 = vadd.f32 %v1052, %v1100
  %v1102 = vpop.f32.mrf.mxu0
  %v1103 = vadd.f32 %v1054, %v1102
  %1104 = vmatmul.bf16.gmra.mxu0 %v653
  %v1105 = vpop.f32.mrf.mxu0
  %v1106 = vadd.f32 %v1057, %v1105
  %v1107 = vpop.f32.mrf.mxu0
  %v1108 = vadd.f32 %v1059, %v1107
  %1109 = vdwg.mxu0
  %vm1110 = vcmask 400384
  %v1111 = vsel %vm1110, %v1071, 0.0
  %1112 = vadd.xlane.f32.xlu0 %v1111
  %v1113 = vpop.xlane.xlu0 %1112
  %v1114 = vsel %vm1110, %v1073, 0.0
  %1115 = vadd.xlane.f32.xlu0 %v1114
  %v1116 = vpop.xlane.xlu0 %1115
  %v1117 = vsel %vm1110, %v1076, 0.0
  %1118 = vadd.xlane.f32.xlu0 %v1117
  %v1119 = vpop.xlane.xlu0 %1118
  %v1120 = vsel %vm1110, %v1078, 0.0
  %1121 = vadd.xlane.f32.xlu0 %v1120
  %v1122 = vpop.xlane.xlu0 %1121
  %v1123 = vsel %vm1110, %v1081, 0.0
  %1124 = vadd.xlane.f32.xlu0 %v1123
  %v1125 = vpop.xlane.xlu0 %1124
  %v1126 = vsel %vm1110, %v1083, 0.0
  %1127 = vadd.xlane.f32.xlu0 %v1126
  %v1128 = vpop.xlane.xlu0 %1127
  %v1129 = vsel %vm1110, %v1086, 0.0
  %1130 = vadd.xlane.f32.xlu0 %v1129
  %v1131 = vpop.xlane.xlu0 %1130
  %v1132 = vsel %vm1110, %v1088, 0.0
  %1133 = vadd.xlane.f32.xlu0 %v1132
  %v1134 = vpop.xlane.xlu0 %1133
  %v1135 = vsel %vm1110, %v1091, 0.0
  %1136 = vadd.xlane.f32.xlu0 %v1135
  %v1137 = vpop.xlane.xlu0 %1136
  %v1138 = vsel %vm1110, %v1093, 0.0
  %1139 = vadd.xlane.f32.xlu0 %v1138
  %v1140 = vpop.xlane.xlu0 %1139
  %v1141 = vsel %vm1110, %v1096, 0.0
  %1142 = vadd.xlane.f32.xlu0 %v1141
  %v1143 = vpop.xlane.xlu0 %1142
  %v1144 = vsel %vm1110, %v1098, 0.0
  %1145 = vadd.xlane.f32.xlu0 %v1144
  %v1146 = vpop.xlane.xlu0 %1145
  %v1147 = vsel %vm1110, %v1101, 0.0
  %1148 = vadd.xlane.f32.xlu0 %v1147
  %v1149 = vpop.xlane.xlu0 %1148
  %v1150 = vsel %vm1110, %v1103, 0.0
  %1151 = vadd.xlane.f32.xlu0 %v1150
  %v1152 = vpop.xlane.xlu0 %1151
  %v1153 = vsel %vm1110, %v1106, 0.0
  %1154 = vadd.xlane.f32.xlu0 %v1153
  %v1155 = vpop.xlane.xlu0 %1154
  %v1156 = vsel %vm1110, %v1108, 0.0
  %1157 = vadd.xlane.f32.xlu0 %v1156
  %v1158 = vpop.xlane.xlu0 %1157
  %v1159 = vmul.f32 %v1071, %v1071
  %v1160 = vmul.f32 %v1073, %v1073
  %v1161 = vmul.f32 %v1076, %v1076
  %v1162 = vmul.f32 %v1078, %v1078
  %v1163 = vmul.f32 %v1081, %v1081
  %v1164 = vmul.f32 %v1083, %v1083
  %v1165 = vmul.f32 %v1086, %v1086
  %v1166 = vmul.f32 %v1088, %v1088
  %v1167 = vmul.f32 %v1091, %v1091
  %v1168 = vmul.f32 %v1093, %v1093
  %v1169 = vmul.f32 %v1096, %v1096
  %v1170 = vmul.f32 %v1098, %v1098
  %v1171 = vmul.f32 %v1101, %v1101
  %v1172 = vmul.f32 %v1103, %v1103
  %v1173 = vmul.f32 %v1106, %v1106
  %v1174 = vmul.f32 %v1108, %v1108
  %v1175 = vsel %vm1110, %v1159, 0.0
  %1176 = vadd.xlane.f32.xlu0 %v1175
  %v1177 = vpop.xlane.xlu0 %1176
  %v1178 = vsel %vm1110, %v1160, 0.0
  %1179 = vadd.xlane.f32.xlu0 %v1178
  %v1180 = vpop.xlane.xlu0 %1179
  %v1181 = vsel %vm1110, %v1161, 0.0
  %1182 = vadd.xlane.f32.xlu0 %v1181
  %v1183 = vpop.xlane.xlu0 %1182
  %v1184 = vsel %vm1110, %v1162, 0.0
  %1185 = vadd.xlane.f32.xlu0 %v1184
  %v1186 = vpop.xlane.xlu0 %1185
  %v1187 = vsel %vm1110, %v1163, 0.0
  %1188 = vadd.xlane.f32.xlu0 %v1187
  %v1189 = vpop.xlane.xlu0 %1188
  %v1190 = vsel %vm1110, %v1164, 0.0
  %1191 = vadd.xlane.f32.xlu0 %v1190
  %v1192 = vpop.xlane.xlu0 %1191
  %v1193 = vsel %vm1110, %v1165, 0.0
  %1194 = vadd.xlane.f32.xlu0 %v1193
  %v1195 = vpop.xlane.xlu0 %1194
  %v1196 = vsel %vm1110, %v1166, 0.0
  %1197 = vadd.xlane.f32.xlu0 %v1196
  %v1198 = vpop.xlane.xlu0 %1197
  %v1199 = vsel %vm1110, %v1167, 0.0
  %1200 = vadd.xlane.f32.xlu0 %v1199
  %v1201 = vpop.xlane.xlu0 %1200
  %v1202 = vsel %vm1110, %v1168, 0.0
  %1203 = vadd.xlane.f32.xlu0 %v1202
  %v1204 = vpop.xlane.xlu0 %1203
  %v1205 = vsel %vm1110, %v1169, 0.0
  %1206 = vadd.xlane.f32.xlu0 %v1205
  %v1207 = vpop.xlane.xlu0 %1206
  %v1208 = vsel %vm1110, %v1170, 0.0
  %1209 = vadd.xlane.f32.xlu0 %v1208
  %v1210 = vpop.xlane.xlu0 %1209
  %v1211 = vsel %vm1110, %v1171, 0.0
  %1212 = vadd.xlane.f32.xlu0 %v1211
  %v1213 = vpop.xlane.xlu0 %1212
  %v1214 = vsel %vm1110, %v1172, 0.0
  %1215 = vadd.xlane.f32.xlu0 %v1214
  %v1216 = vpop.xlane.xlu0 %1215
  %v1217 = vsel %vm1110, %v1173, 0.0
  %1218 = vadd.xlane.f32.xlu0 %v1217
  %v1219 = vpop.xlane.xlu0 %1218
  %v1220 = vsel %vm1110, %v1174, 0.0
  %1221 = vadd.xlane.f32.xlu0 %v1220
  %v1222 = vpop.xlane.xlu0 %1221
  %v1223 = vmul.f32 %v1113, 0.020408163
  %v1224 = vmul.f32 %v1116, 0.020408163
  %v1225 = vmul.f32 %v1119, 0.020408163
  %v1226 = vmul.f32 %v1122, 0.020408163
  %v1227 = vmul.f32 %v1125, 0.020408163
  %v1228 = vmul.f32 %v1128, 0.020408163
  %v1229 = vmul.f32 %v1131, 0.020408163
  %v1230 = vmul.f32 %v1134, 0.020408163
  %v1231 = vmul.f32 %v1137, 0.020408163
  %v1232 = vmul.f32 %v1140, 0.020408163
  %v1233 = vmul.f32 %v1143, 0.020408163
  %v1234 = vmul.f32 %v1146, 0.020408163
  %v1235 = vmul.f32 %v1149, 0.020408163
  %v1236 = vmul.f32 %v1152, 0.020408163
  %v1237 = vmul.f32 %v1155, 0.020408163
  %v1238 = vmul.f32 %v1158, 0.020408163
  %v1239 = vmul.f32 %v1177, 0.020408163
  %v1240 = vmul.f32 %v1180, 0.020408163
  %v1241 = vmul.f32 %v1183, 0.020408163
  %v1242 = vmul.f32 %v1186, 0.020408163
  %v1243 = vmul.f32 %v1189, 0.020408163
  %v1244 = vmul.f32 %v1192, 0.020408163
  %v1245 = vmul.f32 %v1195, 0.020408163
  %v1246 = vmul.f32 %v1198, 0.020408163
  %v1247 = vmul.f32 %v1201, 0.020408163
  %v1248 = vmul.f32 %v1204, 0.020408163
  %v1249 = vmul.f32 %v1207, 0.020408163
  %v1250 = vmul.f32 %v1210, 0.020408163
  %v1251 = vmul.f32 %v1213, 0.020408163
  %v1252 = vmul.f32 %v1216, 0.020408163
  %v1253 = vmul.f32 %v1219, 0.020408163
  %v1254 = vmul.f32 %v1222, 0.020408163
  %v1255 = vmul.f32 %v1223, %v1223
  %v1256 = vmul.f32 %v1224, %v1224
  %v1257 = vmul.f32 %v1225, %v1225
  %v1258 = vmul.f32 %v1226, %v1226
  %v1259 = vmul.f32 %v1227, %v1227
  %v1260 = vmul.f32 %v1228, %v1228
  %v1261 = vmul.f32 %v1229, %v1229
  %v1262 = vmul.f32 %v1230, %v1230
  %v1263 = vmul.f32 %v1231, %v1231
  %v1264 = vmul.f32 %v1232, %v1232
  %v1265 = vmul.f32 %v1233, %v1233
  %v1266 = vmul.f32 %v1234, %v1234
  %v1267 = vmul.f32 %v1235, %v1235
  %v1268 = vmul.f32 %v1236, %v1236
  %v1269 = vmul.f32 %v1237, %v1237
  %v1270 = vmul.f32 %v1238, %v1238
  %v1271 = vsub.f32 %v1239, %v1255
  %v1272 = vsub.f32 %v1240, %v1256
  %v1273 = vsub.f32 %v1241, %v1257
  %v1274 = vsub.f32 %v1242, %v1258
  %v1275 = vsub.f32 %v1243, %v1259
  %v1276 = vsub.f32 %v1244, %v1260
  %v1277 = vsub.f32 %v1245, %v1261
  %v1278 = vsub.f32 %v1246, %v1262
  %v1279 = vsub.f32 %v1247, %v1263
  %v1280 = vsub.f32 %v1248, %v1264
  %v1281 = vsub.f32 %v1249, %v1265
  %v1282 = vsub.f32 %v1250, %v1266
  %v1283 = vsub.f32 %v1251, %v1267
  %v1284 = vsub.f32 %v1252, %v1268
  %v1285 = vsub.f32 %v1253, %v1269
  %v1286 = vsub.f32 %v1254, %v1270
  %v1287 = vadd.f32 %v1271, 1e-05
  %v1288 = vadd.f32 %v1272, 1e-05
  %v1289 = vadd.f32 %v1273, 1e-05
  %v1290 = vadd.f32 %v1274, 1e-05
  %v1291 = vadd.f32 %v1275, 1e-05
  %v1292 = vadd.f32 %v1276, 1e-05
  %v1293 = vadd.f32 %v1277, 1e-05
  %v1294 = vadd.f32 %v1278, 1e-05
  %v1295 = vadd.f32 %v1279, 1e-05
  %v1296 = vadd.f32 %v1280, 1e-05
  %v1297 = vadd.f32 %v1281, 1e-05
  %v1298 = vadd.f32 %v1282, 1e-05
  %v1299 = vadd.f32 %v1283, 1e-05
  %v1300 = vadd.f32 %v1284, 1e-05
  %v1301 = vadd.f32 %v1285, 1e-05
  %v1302 = vadd.f32 %v1286, 1e-05
  %v1303 = vrsqrt.pop %v1287
  %v1304 = vmul.f32 %v1303, %v1287
  %v1305 = vmul.f32 %v1304, %v1303
  %v1306 = vmul.f32 0.5, %v1305
  %v1307 = vsub.f32 1.5, %v1306
  %v1308 = vmul.f32 %v1303, %v1307
  %vm1309 = vweird.f32 %v1287
  %vm1310 = vweird.f32 %v1303
  %vm1311 = vmor %vm1309, %vm1310
  %v1312 = vsel %vm1311, %v1303, %v1308
  %v1313 = vrsqrt.pop %v1288
  %v1314 = vmul.f32 %v1313, %v1288
  %v1315 = vmul.f32 %v1314, %v1313
  %v1316 = vmul.f32 0.5, %v1315
  %v1317 = vsub.f32 1.5, %v1316
  %v1318 = vmul.f32 %v1313, %v1317
  %vm1319 = vweird.f32 %v1288
  %vm1320 = vweird.f32 %v1313
  %vm1321 = vmor %vm1319, %vm1320
  %v1322 = vsel %vm1321, %v1313, %v1318
  %v1323 = vrsqrt.pop %v1289
  %v1324 = vmul.f32 %v1323, %v1289
  %v1325 = vmul.f32 %v1324, %v1323
  %v1326 = vmul.f32 0.5, %v1325
  %v1327 = vsub.f32 1.5, %v1326
  %v1328 = vmul.f32 %v1323, %v1327
  %vm1329 = vweird.f32 %v1289
  %vm1330 = vweird.f32 %v1323
  %vm1331 = vmor %vm1329, %vm1330
  %v1332 = vsel %vm1331, %v1323, %v1328
  %v1333 = vrsqrt.pop %v1290
  %v1334 = vmul.f32 %v1333, %v1290
  %v1335 = vmul.f32 %v1334, %v1333
  %v1336 = vmul.f32 0.5, %v1335
  %v1337 = vsub.f32 1.5, %v1336
  %v1338 = vmul.f32 %v1333, %v1337
  %vm1339 = vweird.f32 %v1290
  %vm1340 = vweird.f32 %v1333
  %vm1341 = vmor %vm1339, %vm1340
  %v1342 = vsel %vm1341, %v1333, %v1338
  %v1343 = vrsqrt.pop %v1291
  %v1344 = vmul.f32 %v1343, %v1291
  %v1345 = vmul.f32 %v1344, %v1343
  %v1346 = vmul.f32 0.5, %v1345
  %v1347 = vsub.f32 1.5, %v1346
  %v1348 = vmul.f32 %v1343, %v1347
  %vm1349 = vweird.f32 %v1291
  %vm1350 = vweird.f32 %v1343
  %vm1351 = vmor %vm1349, %vm1350
  %v1352 = vsel %vm1351, %v1343, %v1348
  %v1353 = vrsqrt.pop %v1292
  %v1354 = vmul.f32 %v1353, %v1292
  %v1355 = vmul.f32 %v1354, %v1353
  %v1356 = vmul.f32 0.5, %v1355
  %v1357 = vsub.f32 1.5, %v1356
  %v1358 = vmul.f32 %v1353, %v1357
  %vm1359 = vweird.f32 %v1292
  %vm1360 = vweird.f32 %v1353
  %vm1361 = vmor %vm1359, %vm1360
  %v1362 = vsel %vm1361, %v1353, %v1358
  %v1363 = vrsqrt.pop %v1293
  %v1364 = vmul.f32 %v1363, %v1293
  %v1365 = vmul.f32 %v1364, %v1363
  %v1366 = vmul.f32 0.5, %v1365
  %v1367 = vsub.f32 1.5, %v1366
  %v1368 = vmul.f32 %v1363, %v1367
  %vm1369 = vweird.f32 %v1293
  %vm1370 = vweird.f32 %v1363
  %vm1371 = vmor %vm1369, %vm1370
  %v1372 = vsel %vm1371, %v1363, %v1368
  %v1373 = vrsqrt.pop %v1294
  %v1374 = vmul.f32 %v1373, %v1294
  %v1375 = vmul.f32 %v1374, %v1373
  %v1376 = vmul.f32 0.5, %v1375
  %v1377 = vsub.f32 1.5, %v1376
  %v1378 = vmul.f32 %v1373, %v1377
  %vm1379 = vweird.f32 %v1294
  %vm1380 = vweird.f32 %v1373
  %vm1381 = vmor %vm1379, %vm1380
  %v1382 = vsel %vm1381, %v1373, %v1378
  %v1383 = vrsqrt.pop %v1295
  %v1384 = vmul.f32 %v1383, %v1295
  %v1385 = vmul.f32 %v1384, %v1383
  %v1386 = vmul.f32 0.5, %v1385
  %v1387 = vsub.f32 1.5, %v1386
  %v1388 = vmul.f32 %v1383, %v1387
  %vm1389 = vweird.f32 %v1295
  %vm1390 = vweird.f32 %v1383
  %vm1391 = vmor %vm1389, %vm1390
  %v1392 = vsel %vm1391, %v1383, %v1388
  %v1393 = vrsqrt.pop %v1296
  %v1394 = vmul.f32 %v1393, %v1296
  %v1395 = vmul.f32 %v1394, %v1393
  %v1396 = vmul.f32 0.5, %v1395
  %v1397 = vsub.f32 1.5, %v1396
  %v1398 = vmul.f32 %v1393, %v1397
  %vm1399 = vweird.f32 %v1296
  %vm1400 = vweird.f32 %v1393
  %vm1401 = vmor %vm1399, %vm1400
  %v1402 = vsel %vm1401, %v1393, %v1398
  %v1403 = vrsqrt.pop %v1297
  %v1404 = vmul.f32 %v1403, %v1297
  %v1405 = vmul.f32 %v1404, %v1403
  %v1406 = vmul.f32 0.5, %v1405
  %v1407 = vsub.f32 1.5, %v1406
  %v1408 = vmul.f32 %v1403, %v1407
  %vm1409 = vweird.f32 %v1297
  %vm1410 = vweird.f32 %v1403
  %vm1411 = vmor %vm1409, %vm1410
  %v1412 = vsel %vm1411, %v1403, %v1408
  %v1413 = vrsqrt.pop %v1298
  %v1414 = vmul.f32 %v1413, %v1298
  %v1415 = vmul.f32 %v1414, %v1413
  %v1416 = vmul.f32 0.5, %v1415
  %v1417 = vsub.f32 1.5, %v1416
  %v1418 = vmul.f32 %v1413, %v1417
  %vm1419 = vweird.f32 %v1298
  %vm1420 = vweird.f32 %v1413
  %vm1421 = vmor %vm1419, %vm1420
  %v1422 = vsel %vm1421, %v1413, %v1418
  %v1423 = vrsqrt.pop %v1299
  %v1424 = vmul.f32 %v1423, %v1299
  %v1425 = vmul.f32 %v1424, %v1423
  %v1426 = vmul.f32 0.5, %v1425
  %v1427 = vsub.f32 1.5, %v1426
  %v1428 = vmul.f32 %v1423, %v1427
  %vm1429 = vweird.f32 %v1299
  %vm1430 = vweird.f32 %v1423
  %vm1431 = vmor %vm1429, %vm1430
  %v1432 = vsel %vm1431, %v1423, %v1428
  %v1433 = vrsqrt.pop %v1300
  %v1434 = vmul.f32 %v1433, %v1300
  %v1435 = vmul.f32 %v1434, %v1433
  %v1436 = vmul.f32 0.5, %v1435
  %v1437 = vsub.f32 1.5, %v1436
  %v1438 = vmul.f32 %v1433, %v1437
  %vm1439 = vweird.f32 %v1300
  %vm1440 = vweird.f32 %v1433
  %vm1441 = vmor %vm1439, %vm1440
  %v1442 = vsel %vm1441, %v1433, %v1438
  %v1443 = vrsqrt.pop %v1301
  %v1444 = vmul.f32 %v1443, %v1301
  %v1445 = vmul.f32 %v1444, %v1443
  %v1446 = vmul.f32 0.5, %v1445
  %v1447 = vsub.f32 1.5, %v1446
  %v1448 = vmul.f32 %v1443, %v1447
  %vm1449 = vweird.f32 %v1301
  %vm1450 = vweird.f32 %v1443
  %vm1451 = vmor %vm1449, %vm1450
  %v1452 = vsel %vm1451, %v1443, %v1448
  %v1453 = vrsqrt.pop %v1302
  %v1454 = vmul.f32 %v1453, %v1302
  %v1455 = vmul.f32 %v1454, %v1453
  %v1456 = vmul.f32 0.5, %v1455
  %v1457 = vsub.f32 1.5, %v1456
  %v1458 = vmul.f32 %v1453, %v1457
  %vm1459 = vweird.f32 %v1302
  %vm1460 = vweird.f32 %v1453
  %vm1461 = vmor %vm1459, %vm1460
  %v1462 = vsel %vm1461, %v1453, %v1458
  %v1463 = vld [vmem:[%s2] sm:$0xff]
  %v1464 = vld [vmem:[%s2 + $0x8] sm:$0xff]
  %v1465 = vld [vmem:[%s2 + $0x10] sm:$0xff]
  %v1466 = vld [vmem:[%s2 + $0x18] sm:$0xff]
  %v1467 = vld [vmem:[%s2 + $0x20] sm:$0xff]
  %v1468 = vld [vmem:[%s2 + $0x28] sm:$0xff]
  %v1469 = vld [vmem:[%s2 + $0x30] sm:$0xff]
  %v1470 = vld [vmem:[%s2 + $0x38] sm:$0xff]
  %v1471 = vld [vmem:[%s2 + $0x40] sm:$0xff]
  %v1472 = vld [vmem:[%s2 + $0x48] sm:$0xff]
  %v1473 = vld [vmem:[%s2 + $0x50] sm:$0xff]
  %v1474 = vld [vmem:[%s2 + $0x58] sm:$0xff]
  %v1475 = vld [vmem:[%s2 + $0x60] sm:$0xff]
  %v1476 = vld [vmem:[%s2 + $0x68] sm:$0xff]
  %v1477 = vld [vmem:[%s2 + $0x70] sm:$0xff]
  %v1478 = vld [vmem:[%s2 + $0x78] sm:$0xff]
  %v1479 = vmul.f32 %v1312, %v1463
  %v1480 = vmul.f32 %v1322, %v1464
  %v1481 = vmul.f32 %v1332, %v1465
  %v1482 = vmul.f32 %v1342, %v1466
  %v1483 = vmul.f32 %v1352, %v1467
  %v1484 = vmul.f32 %v1362, %v1468
  %v1485 = vmul.f32 %v1372, %v1469
  %v1486 = vmul.f32 %v1382, %v1470
  %v1487 = vmul.f32 %v1392, %v1471
  %v1488 = vmul.f32 %v1402, %v1472
  %v1489 = vmul.f32 %v1412, %v1473
  %v1490 = vmul.f32 %v1422, %v1474
  %v1491 = vmul.f32 %v1432, %v1475
  %v1492 = vmul.f32 %v1442, %v1476
  %v1493 = vmul.f32 %v1452, %v1477
  %v1494 = vmul.f32 %v1462, %v1478
  %v1495 = vmul.f32 %v1223, %v1479
  %v1496 = vmul.f32 %v1224, %v1480
  %v1497 = vmul.f32 %v1225, %v1481
  %v1498 = vmul.f32 %v1226, %v1482
  %v1499 = vmul.f32 %v1227, %v1483
  %v1500 = vmul.f32 %v1228, %v1484
  %v1501 = vmul.f32 %v1229, %v1485
  %v1502 = vmul.f32 %v1230, %v1486
  %v1503 = vmul.f32 %v1231, %v1487
  %v1504 = vmul.f32 %v1232, %v1488
  %v1505 = vmul.f32 %v1233, %v1489
  %v1506 = vmul.f32 %v1234, %v1490
  %v1507 = vmul.f32 %v1235, %v1491
  %v1508 = vmul.f32 %v1236, %v1492
  %v1509 = vmul.f32 %v1237, %v1493
  %v1510 = vmul.f32 %v1238, %v1494
  %1527 = vrot.lane.b32.xlu0 %v1495, 1
  %v1528 = vpop.permute.xlu0 %1527
  %1529 = vrot.lane.b32.xlu0 %v1496, 1
  %v1530 = vpop.permute.xlu0 %1529
  %1531 = vrot.lane.b32.xlu0 %v1497, 1
  %v1532 = vpop.permute.xlu0 %1531
  %1533 = vrot.lane.b32.xlu0 %v1498, 1
  %v1534 = vpop.permute.xlu0 %1533
  %1535 = vrot.lane.b32.xlu0 %v1499, 1
  %v1536 = vpop.permute.xlu0 %1535
  %1537 = vrot.lane.b32.xlu0 %v1500, 1
  %v1538 = vpop.permute.xlu0 %1537
  %1539 = vrot.lane.b32.xlu0 %v1501, 1
  %v1540 = vpop.permute.xlu0 %1539
  %1541 = vrot.lane.b32.xlu0 %v1502, 1
  %v1542 = vpop.permute.xlu0 %1541
  %1543 = vrot.lane.b32.xlu0 %v1503, 1
  %v1544 = vpop.permute.xlu0 %1543
  %1545 = vrot.lane.b32.xlu0 %v1504, 1
  %v1546 = vpop.permute.xlu0 %1545
  %1547 = vrot.lane.b32.xlu0 %v1505, 1
  %v1548 = vpop.permute.xlu0 %1547
  %1549 = vrot.lane.b32.xlu0 %v1506, 1
  %v1550 = vpop.permute.xlu0 %1549
  %1551 = vrot.lane.b32.xlu0 %v1507, 1
  %v1552 = vpop.permute.xlu0 %1551
  %1553 = vrot.lane.b32.xlu0 %v1508, 1
  %v1554 = vpop.permute.xlu0 %1553
  %1555 = vrot.lane.b32.xlu0 %v1509, 1
  %v1556 = vpop.permute.xlu0 %1555
  %1557 = vrot.lane.b32.xlu0 %v1510, 1
  %v1558 = vpop.permute.xlu0 %1557
  %v1575 = vsub.f32 %v1463, %v1528
  %v1576 = vsub.f32 %v1464, %v1530
  %v1577 = vsub.f32 %v1465, %v1532
  %v1578 = vsub.f32 %v1466, %v1534
  %v1579 = vsub.f32 %v1467, %v1536
  %v1580 = vsub.f32 %v1468, %v1538
  %v1581 = vsub.f32 %v1469, %v1540
  %v1582 = vsub.f32 %v1470, %v1542
  %v1583 = vsub.f32 %v1471, %v1544
  %v1584 = vsub.f32 %v1472, %v1546
  %v1585 = vsub.f32 %v1473, %v1548
  %v1586 = vsub.f32 %v1474, %v1550
  %v1587 = vsub.f32 %v1475, %v1552
  %v1588 = vsub.f32 %v1476, %v1554
  %v1589 = vsub.f32 %v1477, %v1556
  %v1590 = vsub.f32 %v1478, %v1558
  %1592 = vset.pattern.permute.xlu0 0
  %1593 = vperm.xlu0 %1592, %v1479
  %v1594 = vpop.permute.xlu0 %1593
  %1597 = vset.pattern.permute.xlu0 0
  %1598 = vperm.xlu0 %1597, %v1480
  %v1599 = vpop.permute.xlu0 %1598
  %1602 = vset.pattern.permute.xlu0 0
  %1603 = vperm.xlu0 %1602, %v1481
  %v1604 = vpop.permute.xlu0 %1603
  %1607 = vset.pattern.permute.xlu0 0
  %1608 = vperm.xlu0 %1607, %v1482
  %v1609 = vpop.permute.xlu0 %1608
  %1612 = vset.pattern.permute.xlu0 0
  %1613 = vperm.xlu0 %1612, %v1483
  %v1614 = vpop.permute.xlu0 %1613
  %1617 = vset.pattern.permute.xlu0 0
  %1618 = vperm.xlu0 %1617, %v1484
  %v1619 = vpop.permute.xlu0 %1618
  %1622 = vset.pattern.permute.xlu0 0
  %1623 = vperm.xlu0 %1622, %v1485
  %v1624 = vpop.permute.xlu0 %1623
  %1627 = vset.pattern.permute.xlu0 0
  %1628 = vperm.xlu0 %1627, %v1486
  %v1629 = vpop.permute.xlu0 %1628
  %1632 = vset.pattern.permute.xlu0 0
  %1633 = vperm.xlu0 %1632, %v1487
  %v1634 = vpop.permute.xlu0 %1633
  %1637 = vset.pattern.permute.xlu0 0
  %1638 = vperm.xlu0 %1637, %v1488
  %v1639 = vpop.permute.xlu0 %1638
  %1642 = vset.pattern.permute.xlu0 0
  %1643 = vperm.xlu0 %1642, %v1489
  %v1644 = vpop.permute.xlu0 %1643
  %1647 = vset.pattern.permute.xlu0 0
  %1648 = vperm.xlu0 %1647, %v1490
  %v1649 = vpop.permute.xlu0 %1648
  %1652 = vset.pattern.permute.xlu0 0
  %1653 = vperm.xlu0 %1652, %v1491
  %v1654 = vpop.permute.xlu0 %1653
  %1657 = vset.pattern.permute.xlu0 0
  %1658 = vperm.xlu0 %1657, %v1492
  %v1659 = vpop.permute.xlu0 %1658
  %1662 = vset.pattern.permute.xlu0 0
  %1663 = vperm.xlu0 %1662, %v1493
  %v1664 = vpop.permute.xlu0 %1663
  %1667 = vset.pattern.permute.xlu0 0
  %1668 = vperm.xlu0 %1667, %v1494
  %v1669 = vpop.permute.xlu0 %1668
  %v1671 = vmul.f32 %v1071, %v1594
  %v1672 = vmul.f32 %v1073, %v1599
  %v1673 = vmul.f32 %v1076, %v1604
  %v1674 = vmul.f32 %v1078, %v1609
  %v1675 = vmul.f32 %v1081, %v1614
  %v1676 = vmul.f32 %v1083, %v1619
  %v1677 = vmul.f32 %v1086, %v1624
  %v1678 = vmul.f32 %v1088, %v1629
  %v1679 = vmul.f32 %v1091, %v1634
  %v1680 = vmul.f32 %v1093, %v1639
  %v1681 = vmul.f32 %v1096, %v1644
  %v1682 = vmul.f32 %v1098, %v1649
  %v1683 = vmul.f32 %v1101, %v1654
  %v1684 = vmul.f32 %v1103, %v1659
  %v1685 = vmul.f32 %v1106, %v1664
  %v1686 = vmul.f32 %v1108, %v1669
  %1688 = vset.pattern.permute.xlu0 1
  %1689 = vperm.xlu0 %1688, %v1575
  %v1690 = vpop.permute.xlu0 %1689
  %1693 = vset.pattern.permute.xlu0 1
  %1694 = vperm.xlu0 %1693, %v1576
  %v1695 = vpop.permute.xlu0 %1694
  %1698 = vset.pattern.permute.xlu0 1
  %1699 = vperm.xlu0 %1698, %v1577
  %v1700 = vpop.permute.xlu0 %1699
  %1703 = vset.pattern.permute.xlu0 1
  %1704 = vperm.xlu0 %1703, %v1578
  %v1705 = vpop.permute.xlu0 %1704
  %1708 = vset.pattern.permute.xlu0 1
  %1709 = vperm.xlu0 %1708, %v1579
  %v1710 = vpop.permute.xlu0 %1709
  %1713 = vset.pattern.permute.xlu0 1
  %1714 = vperm.xlu0 %1713, %v1580
  %v1715 = vpop.permute.xlu0 %1714
  %1718 = vset.pattern.permute.xlu0 1
  %1719 = vperm.xlu0 %1718, %v1581
  %v1720 = vpop.permute.xlu0 %1719
  %1723 = vset.pattern.permute.xlu0 1
  %1724 = vperm.xlu0 %1723, %v1582
  %v1725 = vpop.permute.xlu0 %1724
  %1728 = vset.pattern.permute.xlu0 1
  %1729 = vperm.xlu0 %1728, %v1583
  %v1730 = vpop.permute.xlu0 %1729
  %1733 = vset.pattern.permute.xlu0 1
  %1734 = vperm.xlu0 %1733, %v1584
  %v1735 = vpop.permute.xlu0 %1734
  %1738 = vset.pattern.permute.xlu0 1
  %1739 = vperm.xlu0 %1738, %v1585
  %v1740 = vpop.permute.xlu0 %1739
  %1743 = vset.pattern.permute.xlu0 1
  %1744 = vperm.xlu0 %1743, %v1586
  %v1745 = vpop.permute.xlu0 %1744
  %1748 = vset.pattern.permute.xlu0 1
  %1749 = vperm.xlu0 %1748, %v1587
  %v1750 = vpop.permute.xlu0 %1749
  %1753 = vset.pattern.permute.xlu0 1
  %1754 = vperm.xlu0 %1753, %v1588
  %v1755 = vpop.permute.xlu0 %1754
  %1758 = vset.pattern.permute.xlu0 1
  %1759 = vperm.xlu0 %1758, %v1589
  %v1760 = vpop.permute.xlu0 %1759
  %1763 = vset.pattern.permute.xlu0 1
  %1764 = vperm.xlu0 %1763, %v1590
  %v1765 = vpop.permute.xlu0 %1764
  %v1767 = vadd.f32 %v1671, %v1690
  %v1768 = vadd.f32 %v1672, %v1695
  %v1769 = vadd.f32 %v1673, %v1700
  %v1770 = vadd.f32 %v1674, %v1705
  %v1771 = vadd.f32 %v1675, %v1710
  %v1772 = vadd.f32 %v1676, %v1715
  %v1773 = vadd.f32 %v1677, %v1720
  %v1774 = vadd.f32 %v1678, %v1725
  %v1775 = vadd.f32 %v1679, %v1730
  %v1776 = vadd.f32 %v1680, %v1735
  %v1777 = vadd.f32 %v1681, %v1740
  %v1778 = vadd.f32 %v1682, %v1745
  %v1779 = vadd.f32 %v1683, %v1750
  %v1780 = vadd.f32 %v1684, %v1755
  %v1781 = vadd.f32 %v1685, %v1760
  %v1782 = vadd.f32 %v1686, %v1765
  %1783 = vst.msk [vmem:[%s3] sm:$0xff] %vm1110, %v1767
  %1784 = vst.msk [vmem:[%s3 + $0x8] sm:$0xff] %vm1110, %v1768
  %1785 = vst.msk [vmem:[%s3 + $0x10] sm:$0xff] %vm1110, %v1769
  %1786 = vst.msk [vmem:[%s3 + $0x18] sm:$0xff] %vm1110, %v1770
  %1787 = vst.msk [vmem:[%s3 + $0x20] sm:$0xff] %vm1110, %v1771
  %1788 = vst.msk [vmem:[%s3 + $0x28] sm:$0xff] %vm1110, %v1772
  %1789 = vst.msk [vmem:[%s3 + $0x30] sm:$0xff] %vm1110, %v1773
  %1790 = vst.msk [vmem:[%s3 + $0x38] sm:$0xff] %vm1110, %v1774
  %1791 = vst.msk [vmem:[%s3 + $0x40] sm:$0xff] %vm1110, %v1775
  %1792 = vst.msk [vmem:[%s3 + $0x48] sm:$0xff] %vm1110, %v1776
  %1793 = vst.msk [vmem:[%s3 + $0x50] sm:$0xff] %vm1110, %v1777
  %1794 = vst.msk [vmem:[%s3 + $0x58] sm:$0xff] %vm1110, %v1778
  %1795 = vst.msk [vmem:[%s3 + $0x60] sm:$0xff] %vm1110, %v1779
  %1796 = vst.msk [vmem:[%s3 + $0x68] sm:$0xff] %vm1110, %v1780
  %1797 = vst.msk [vmem:[%s3 + $0x70] sm:$0xff] %vm1110, %v1781
  %1798 = vst.msk [vmem:[%s3 + $0x78] sm:$0xff] %vm1110, %v1782
  // Predicated region
  $region14: #{tpu_custom_call.1} parent=0 // pred_check
    _
  $region15: #{tpu_custom_call.1} parent=0 // pred_check_branch
    %1800 = sbr.rel (0) target = $region17
  $region16: #{tpu_custom_call.1} parent=0 // pred_region
    _
  $region17: #{tpu_custom_call.1} parent=0 // pred_fallthru
    _
  // Predicated region
  $region18: #{tpu_custom_call.1} parent=0 // pred_check
    _
  $region19: #{tpu_custom_call.1} parent=0 // pred_check_branch
    %1802 = sbr.rel (0) target = $region21
  $region20: #{tpu_custom_call.1} parent=0 // pred_region
    _
  $region21: #{tpu_custom_call.1} parent=0 // pred_fallthru
    _

</llo_original>
